<compile_context>
chip_gen: v7x
topology: tpu7x:2x2x1
jax: 0.10.0
libtpu: 0.0.40
codegen_flags: <defaults>
</compile_context>

<pallas_src>
import functools

import jax
import jax.numpy as jnp
from jax import lax
from jax.experimental import pallas as pl
from jax.experimental.pallas import tpu as pltpu


# ----------------------------------------------------------------------------
# bf16-input / f32-accumulate matmul helpers (MXU friendly, no transposes)
# ----------------------------------------------------------------------------
def _bf16_dot(a, b):
    # [M, K] x [K, N] -> [M, N]
    return lax.dot_general(
        a.astype(jnp.bfloat16), b.astype(jnp.bfloat16),
        dimension_numbers=(((a.ndim - 1,), (0,)), ((), ())),
        preferred_element_type=jnp.float32)


def _bf16_dot_t(a, b):
    # contract trailing axes of BOTH operands: [M, K] x [N, K] -> [M, N]
    return lax.dot_general(
        a.astype(jnp.bfloat16), b.astype(jnp.bfloat16),
        dimension_numbers=(((1,), (1,)), ((), ())),
        preferred_element_type=jnp.float32)


# ----------------------------------------------------------------------------
# Single fused kernel: encoder -> iterative refiner -> packed heads
# ----------------------------------------------------------------------------
def _pflow_fused_kernel(x_ref, w1_ref, b1_ref, w2_ref, wg_ref, b2_ref,
                        q_ref, wr_ref, br_ref, wk_ref,
                        hw_ref, hb_ref, std_ref, mean_ref,
                        inc_ref, heads_ref, nh_ref, e_ref,
                        *, n_iters, n_classes):
    # ---------------- track_and_cell_encoder (MPNN surrogate) ---------------
    x = x_ref[0]                                                    # [N, Fin]
    h = jnp.maximum(_bf16_dot(x, w1_ref[...]) + b1_ref[...], 0.0)   # [N, H]
    m = jnp.mean(h, axis=0, keepdims=True)                          # [1, H]
    h = jnp.maximum(_bf16_dot(h, w2_ref[...])
                    + _bf16_dot(m, wg_ref[...]) + b2_ref[...], 0.0)
    nh_ref[0] = h

    # ---------------- IterativeRefiner surrogate (softmax attention) --------
    e = q_ref[...]                                                  # [P, H]
    scale = float(h.shape[-1]) ** -0.5
    for _ in range(n_iters):                                        # small static unroll
        scores = _bf16_dot_t(e, h) * scale                          # [P, N]
        scores = scores - jnp.max(scores, axis=-1, keepdims=True)
        pexp = jnp.exp(scores)
        attn = pexp * pl.reciprocal(
            jnp.sum(pexp, axis=-1, keepdims=True), approx=True)
        agg = _bf16_dot(attn, h)                                    # [P, H]
        e = jnp.maximum(_bf16_dot(e + agg, wr_ref[...]) + br_ref[...], 0.0)
    e_ref[0] = e

    # ---------------- incidence + indicator + packed hyperedge heads --------
    k = _bf16_dot(h, wk_ref[...])                                   # [N, H]
    inc_logits = _bf16_dot_t(e, k) * scale                          # [P, N]
    heads = _bf16_dot(e, hw_ref[...]) + hb_ref[...]                 # [P, 3+2C+2]

    C = n_classes
    ind_logit = heads[:, 3 + 2 * C + 1:3 + 2 * C + 2]               # [P, 1]
    # single full-block store of the [P, N+1] incidence (+indicator) row
    inc_ref[0] = jax.nn.sigmoid(
        jnp.concatenate([inc_logits, ind_logit], axis=-1))

    pte = heads[:, 0:3]                                             # raw pt/eta/phi
    pte_scaled = pte * std_ref[...] + mean_ref[...]                 # fused undo_scalling
    cm = (heads[:, 3 + 2 * C:3 + 2 * C + 1] > 0.0).astype(jnp.float32)
    # packed epilogue output: [pte(3) | pte_scaled(3) | cc(C) | cn(C) | cm(1)]
    heads_ref[0] = jnp.concatenate(
        [pte, pte_scaled, heads[:, 3:3 + 2 * C], cm], axis=-1)


@functools.partial(jax.jit, static_argnames=("n_iters",))
def pflow_fused_forward(x, params, n_iters):
    B, N, Fin = x.shape
    H = params["enc_w1"].shape[1]
    P = params["ref_q"].shape[0]
    HEADS = params["head_w"].shape[1]          # 3 + 2C + 2
    C = (HEADS - 5) // 2
    HEADS_OUT = 7 + 2 * C                      # 3 + 3 + 2C + 1

    kern = functools.partial(_pflow_fused_kernel, n_iters=n_iters, n_classes=C)
    rep2 = lambda b: (0, 0)                    # replicated weight blocks

    return pl.pallas_call(
        kern,
        out_shape=(
            jax.ShapeDtypeStruct((B, P, N + 1), jnp.float32),     # incidence (+ind)
            jax.ShapeDtypeStruct((B, P, HEADS_OUT), jnp.float32),  # packed heads
            jax.ShapeDtypeStruct((B, N, H), jnp.float32),          # node hidden rep
            jax.ShapeDtypeStruct((B, P, H), jnp.float32),          # hyperedge rep
        ),
        grid=(B,),
        in_specs=[
            pl.BlockSpec((1, N, Fin), lambda b: (b, 0, 0)),
            pl.BlockSpec((Fin, H), rep2),
            pl.BlockSpec((1, H), rep2),
            pl.BlockSpec((H, H), rep2),
            pl.BlockSpec((H, H), rep2),
            pl.BlockSpec((1, H), rep2),
            pl.BlockSpec((P, H), rep2),
            pl.BlockSpec((H, H), rep2),
            pl.BlockSpec((1, H), rep2),
            pl.BlockSpec((H, H), rep2),
            pl.BlockSpec((H, HEADS), rep2),
            pl.BlockSpec((1, HEADS), rep2),
            pl.BlockSpec((1, 3), rep2),
            pl.BlockSpec((1, 3), rep2),
        ],
        out_specs=(
            pl.BlockSpec((1, P, N + 1), lambda b: (b, 0, 0)),
            pl.BlockSpec((1, P, HEADS_OUT), lambda b: (b, 0, 0)),
            pl.BlockSpec((1, N, H), lambda b: (b, 0, 0)),
            pl.BlockSpec((1, P, H), lambda b: (b, 0, 0)),
        ),
        compiler_params=pltpu.CompilerParams(
            dimension_semantics=("parallel",)),
    )(x, params["enc_w1"], params["enc_b1"], params["enc_w2"],
      params["enc_wg"], params["enc_b2"], params["ref_q"], params["ref_wr"],
      params["ref_br"], params["ref_wk"], params["head_w"], params["head_b"],
      params["std"], params["mean"])


# ----------------------------------------------------------------------------
# Parameter packing: fold all head weights/biases (incl. the (1,1) scalars)
# into a single matrix / bias row.
# ----------------------------------------------------------------------------
def pack_params(p, std, mean):
    head_w = jnp.concatenate(
        [p["he_wp"], p["he_wc"], p["he_wn"], p["he_wm"], p["ref_wi"]], axis=1)
    head_b = jnp.concatenate(
        [p["he_bp"], p["he_bc"], p["he_bn"], p["he_bm"], p["ref_bi"]], axis=1)
    return {
        "enc_w1": p["enc_w1"], "enc_b1": p["enc_b1"],
        "enc_w2": p["enc_w2"], "enc_wg": p["enc_wg"], "enc_b2": p["enc_b2"],
        "ref_q": p["ref_q"], "ref_wr": p["ref_wr"], "ref_br": p["ref_br"],
        "ref_wk": p["ref_wk"],
        "head_w": head_w, "head_b": head_b,
        "std": std, "mean": mean,
    }


# ----------------------------------------------------------------------------
# PflowModel wrapper (hypergraph branch)
# ----------------------------------------------------------------------------
class PflowModelPallas:
    def __init__(self, config, params):
        self.config = config
        vt = config["var transform"]
        self.std = jnp.array([[vt["particle_pt"]["std"],
                               vt["particle_eta"]["std"],
                               vt["particle_phi"]["std"]]], jnp.float32)
        self.mean = jnp.array([[vt["particle_pt"]["mean"],
                                vt["particle_eta"]["mean"],
                                vt["particle_phi"]["mean"]]], jnp.float32)
        self.n_classes = params["he_wc"].shape[1]
        self.packed = pack_params(params, self.std, self.mean)

    def _run(self, node_feats, n_iters):
        return pflow_fused_forward(node_feats, self.packed, n_iters=n_iters)

    def _split_heads(self, heads):
        C = self.n_classes
        pte = heads[..., 0:3]
        pte_scaled = heads[..., 3:6]
        cc = heads[..., 6:6 + C]
        cn = heads[..., 6 + C:6 + 2 * C]
        cm = heads[..., 6 + 2 * C:7 + 2 * C]
        return pte, pte_scaled, cc, cn, cm

    def forward(self, node_feats, t_skip, t_bp):
        inc_pred, heads, node_hidden, e = self._run(node_feats, t_skip + t_bp)
        pte, _, cc, cn, cm = self._split_heads(heads)
        nm = 1.0 - cm
        class_pred = (cc, cn, cm, nm)
        g_reps = {"node hidden rep": node_hidden, "hyperedge rep": e}
        return inc_pred, pte, class_pred, g_reps

    def undo_scalling(self, ptetaphi, ignore_zeros=False):
        # standalone affine; the infer() path uses the in-kernel fused version
        out = ptetaphi * self.std + self.mean
        if ignore_zeros:
            mask = jnp.all(ptetaphi == 0.0, axis=-1, keepdims=True)
            out = jnp.where(mask, 0.0, out)
        return out

    def infer(self, node_feats, threshold=None):
        T = self.config["T_TOTAL"]
        inc_pred, heads, _, _ = self._run(node_feats, T)   # t_skip=T-1, t_bp=1
        thr = self.config["indicator_threshold"] if threshold is None else threshold
        indicator = inc_pred[:, :, -1] > thr
        _, pte_scaled, cc, cn, cm = self._split_heads(heads)
        cls_c = jnp.argmax(cc, axis=2)[..., None].astype(jnp.float32)
        cls_n = jnp.argmax(cn, axis=2)[..., None].astype(jnp.float32)
        cls = cls_c * cm + (cls_n + 3.0) * (1.0 - cm)
        particle_pred = jnp.concatenate([pte_scaled, cls], axis=2)
        # TODO(synk): torch's boolean fancy-index particle_pred[indicator] is
        #             ragged; return the dense prediction + mask instead.
        return particle_pred, indicator


# ----------------------------------------------------------------------------
# Deterministic synthetic parameters (torch-style layout, packed in wrapper)
# ----------------------------------------------------------------------------
def init_params(key, fin, hidden, n_particles, n_classes):
    ks = jax.random.split(key, 16)
    s = 0.2

    def n(k, shape):
        return (s * jax.random.normal(k, shape)).astype(jnp.float32)

    return {
        "enc_w1": n(ks[0], (fin, hidden)),
        "enc_b1": n(ks[1], (1, hidden)),
        "enc_w2": n(ks[2], (hidden, hidden)),
        "enc_wg": n(ks[3], (hidden, hidden)),
        "enc_b2": n(ks[4], (1, hidden)),
        "ref_q":  n(ks[5], (n_particles, hidden)),
        "ref_wr": n(ks[6], (hidden, hidden)),
        "ref_br": n(ks[7], (1, hidden)),
        "ref_wk": n(ks[8], (hidden, hidden)),
        "ref_wi": n(ks[9], (hidden, 1)),
        "ref_bi": n(ks[10], (1, 1)),
        "he_wp":  n(ks[11], (hidden, 3)),
        "he_bp":  n(ks[12], (1, 3)),
        "he_wc":  n(ks[13], (hidden, n_classes)),
        "he_bc":  jnp.zeros((1, n_classes), jnp.float32),
        "he_wn":  n(ks[14], (hidden, n_classes)),
        "he_bn":  jnp.zeros((1, n_classes), jnp.float32),
        "he_wm":  n(ks[15], (hidden, 1)),
        "he_bm":  jnp.zeros((1, 1), jnp.float32),
    }


if __name__ == "__main__":
    B, N_NODES, F_IN, HIDDEN, N_PART, N_CLS = 2, 16, 8, 32, 8, 3

    config = {
        "output model type": "hypergraph",
        "T_TOTAL": 3,
        "indicator_threshold": 0.5,
        "var transform": {
            "particle_pt":  {"mean": 1.5, "std": 0.8},
            "particle_eta": {"mean": 0.0, "std": 1.2},
            "particle_phi": {"mean": 0.0, "std": 1.8},
        },
    }

    key = jax.random.PRNGKey(0)
    k_x, k_p = jax.random.split(key)
    node_feats = jax.random.normal(k_x, (B, N_NODES, F_IN), jnp.float32)
    params = init_params(k_p, F_IN, HIDDEN, N_PART, N_CLS)

    model = PflowModelPallas(config, params)

    # training-style forward (hypergraph branch)
    inc_pred, pte_pred, class_pred, g_reps = model.forward(node_feats,
                                                           t_skip=2, t_bp=1)
    # inference-style path (fused undo_scalling + class merge + indicator)
    particle_pred, indicator = model.infer(node_feats)

    jax.block_until_ready((inc_pred, pte_pred, class_pred, g_reps,
                           particle_pred, indicator))

    assert inc_pred.shape == (B, N_PART, N_NODES + 1)
    assert pte_pred.shape == (B, N_PART, 3)
    assert class_pred[0].shape == (B, N_PART, N_CLS)
    assert class_pred[2].shape == (B, N_PART, 1)
    assert g_reps["node hidden rep"].shape == (B, N_NODES, HIDDEN)
    assert g_reps["hyperedge rep"].shape == (B, N_PART, HIDDEN)
    assert particle_pred.shape == (B, N_PART, 4)
    assert indicator.shape == (B, N_PART)

    print("KERNEL_OK")
</pallas_src>

<mosaic_0001>
module attributes {stable_mosaic.version = 11 : i64} {
  func.func @_pflow_fused_kernel(%arg0: i32, %arg1: memref<1x16x8xf32, #tpu.memory_space<vmem>>, %arg2: memref<8x32xf32, #tpu.memory_space<vmem>>, %arg3: memref<1x32xf32, #tpu.memory_space<vmem>>, %arg4: memref<32x32xf32, #tpu.memory_space<vmem>>, %arg5: memref<32x32xf32, #tpu.memory_space<vmem>>, %arg6: memref<1x32xf32, #tpu.memory_space<vmem>>, %arg7: memref<8x32xf32, #tpu.memory_space<vmem>>, %arg8: memref<32x32xf32, #tpu.memory_space<vmem>>, %arg9: memref<1x32xf32, #tpu.memory_space<vmem>>, %arg10: memref<32x32xf32, #tpu.memory_space<vmem>>, %arg11: memref<32x11xf32, #tpu.memory_space<vmem>>, %arg12: memref<1x11xf32, #tpu.memory_space<vmem>>, %arg13: memref<1x3xf32, #tpu.memory_space<vmem>>, %arg14: memref<1x3xf32, #tpu.memory_space<vmem>>, %arg15: memref<1x8x17xf32, #tpu.memory_space<vmem>>, %arg16: memref<1x8x13xf32, #tpu.memory_space<vmem>>, %arg17: memref<1x16x32xf32, #tpu.memory_space<vmem>>, %arg18: memref<1x8x32xf32, #tpu.memory_space<vmem>>) attributes {dimension_semantics = [#tpu.dimension_semantics<parallel>], iteration_bounds = array<i64: 2>, scalar_prefetch = 0 : i64, scratch_operands = 0 : i64, tpu.core_type = #tpu.core_type<tc>, window_params = [{transform_indices = @transform_0, window_bounds = array<i64: 1, 16, 8>}, {pipeline_mode = #tpu.pipeline_mode<synchronous>, transform_indices = @transform_1, window_bounds = array<i64: 8, 32>}, {pipeline_mode = #tpu.pipeline_mode<synchronous>, transform_indices = @transform_2, window_bounds = array<i64: 1, 32>}, {pipeline_mode = #tpu.pipeline_mode<synchronous>, transform_indices = @transform_3, window_bounds = array<i64: 32, 32>}, {pipeline_mode = #tpu.pipeline_mode<synchronous>, transform_indices = @transform_4, window_bounds = array<i64: 32, 32>}, {pipeline_mode = #tpu.pipeline_mode<synchronous>, transform_indices = @transform_5, window_bounds = array<i64: 1, 32>}, {pipeline_mode = #tpu.pipeline_mode<synchronous>, transform_indices = @transform_6, window_bounds = array<i64: 8, 32>}, {pipeline_mode = #tpu.pipeline_mode<synchronous>, transform_indices = @transform_7, window_bounds = array<i64: 32, 32>}, {pipeline_mode = #tpu.pipeline_mode<synchronous>, transform_indices = @transform_8, window_bounds = array<i64: 1, 32>}, {pipeline_mode = #tpu.pipeline_mode<synchronous>, transform_indices = @transform_9, window_bounds = array<i64: 32, 32>}, {pipeline_mode = #tpu.pipeline_mode<synchronous>, transform_indices = @transform_10, window_bounds = array<i64: 32, 11>}, {pipeline_mode = #tpu.pipeline_mode<synchronous>, transform_indices = @transform_11, window_bounds = array<i64: 1, 11>}, {pipeline_mode = #tpu.pipeline_mode<synchronous>, transform_indices = @transform_12, window_bounds = array<i64: 1, 3>}, {pipeline_mode = #tpu.pipeline_mode<synchronous>, transform_indices = @transform_13, window_bounds = array<i64: 1, 3>}, {transform_indices = @transform_14, window_bounds = array<i64: 1, 8, 17>}, {transform_indices = @transform_15, window_bounds = array<i64: 1, 8, 13>}, {transform_indices = @transform_16, window_bounds = array<i64: 1, 16, 32>}, {transform_indices = @transform_17, window_bounds = array<i64: 1, 8, 32>}]} {
    %c0 = arith.constant 0 : index
    %c0_0 = arith.constant 0 : index
    %c0_1 = arith.constant 0 : index
    %0 = vector.load %arg1[%c0, %c0_0, %c0_1] : memref<1x16x8xf32, #tpu.memory_space<vmem>>, vector<1x16x8xf32>
    %1 = vector.shape_cast %0 : vector<1x16x8xf32> to vector<16x8xf32>
    %c0_2 = arith.constant 0 : index
    %c0_3 = arith.constant 0 : index
    %2 = vector.load %arg2[%c0_2, %c0_3] : memref<8x32xf32, #tpu.memory_space<vmem>>, vector<8x32xf32>
    %3 = arith.truncf %1 : vector<16x8xf32> to vector<16x8xbf16>
    %4 = arith.truncf %2 : vector<8x32xf32> to vector<8x32xbf16>
    %cst = arith.constant dense<0.000000e+00> : vector<16x32xf32>
    %5 = tpu.matmul %3, %4, %cst {dimension_numbers = #tpu.dot_dimension_numbers<[1], [0], [0], [1], [0, 0, 1, 1], [], []>} : vector<16x8xbf16>, vector<8x32xbf16>, vector<16x32xf32> -> vector<16x32xf32>
    %c0_4 = arith.constant 0 : index
    %c0_5 = arith.constant 0 : index
    %6 = vector.load %arg3[%c0_4, %c0_5] : memref<1x32xf32, #tpu.memory_space<vmem>>, vector<1x32xf32>
    %7 = vector.broadcast %6 : vector<1x32xf32> to vector<16x32xf32>
    %8 = arith.addf %5, %7 : vector<16x32xf32>
    %cst_6 = arith.constant 0.000000e+00 : f32
    %9 = vector.broadcast %cst_6 : f32 to vector<16x32xf32>
    %10 = arith.maximumf %8, %9 : vector<16x32xf32>
    %cst_7 = arith.constant dense<0.000000e+00> : vector<32xf32>
    %11 = vector.multi_reduction <add>, %10, %cst_7 [0] : vector<16x32xf32> to vector<32xf32>
    %12 = vector.shape_cast %11 : vector<32xf32> to vector<1x32xf32>
    %cst_8 = arith.constant 1.600000e+01 : f32
    %13 = vector.broadcast %cst_8 : f32 to vector<1x32xf32>
    %14 = arith.divf %12, %13 : vector<1x32xf32>
    %c0_9 = arith.constant 0 : index
    %c0_10 = arith.constant 0 : index
    %15 = vector.load %arg4[%c0_9, %c0_10] : memref<32x32xf32, #tpu.memory_space<vmem>>, vector<32x32xf32>
    %16 = arith.truncf %10 : vector<16x32xf32> to vector<16x32xbf16>
    %17 = arith.truncf %15 : vector<32x32xf32> to vector<32x32xbf16>
    %cst_11 = arith.constant dense<0.000000e+00> : vector<16x32xf32>
    %18 = tpu.matmul %16, %17, %cst_11 {dimension_numbers = #tpu.dot_dimension_numbers<[1], [0], [0], [1], [0, 0, 1, 1], [], []>} : vector<16x32xbf16>, vector<32x32xbf16>, vector<16x32xf32> -> vector<16x32xf32>
    %c0_12 = arith.constant 0 : index
    %c0_13 = arith.constant 0 : index
    %19 = vector.load %arg5[%c0_12, %c0_13] : memref<32x32xf32, #tpu.memory_space<vmem>>, vector<32x32xf32>
    %20 = arith.truncf %14 : vector<1x32xf32> to vector<1x32xbf16>
    %21 = arith.truncf %19 : vector<32x32xf32> to vector<32x32xbf16>
    %cst_14 = arith.constant dense<0.000000e+00> : vector<1x32xf32>
    %22 = tpu.matmul %20, %21, %cst_14 {dimension_numbers = #tpu.dot_dimension_numbers<[1], [0], [0], [1], [0, 0, 1, 1], [], []>} : vector<1x32xbf16>, vector<32x32xbf16>, vector<1x32xf32> -> vector<1x32xf32>
    %23 = vector.broadcast %22 : vector<1x32xf32> to vector<16x32xf32>
    %24 = arith.addf %18, %23 : vector<16x32xf32>
    %c0_15 = arith.constant 0 : index
    %c0_16 = arith.constant 0 : index
    %25 = vector.load %arg6[%c0_15, %c0_16] : memref<1x32xf32, #tpu.memory_space<vmem>>, vector<1x32xf32>
    %26 = vector.broadcast %25 : vector<1x32xf32> to vector<16x32xf32>
    %27 = arith.addf %24, %26 : vector<16x32xf32>
    %cst_17 = arith.constant 0.000000e+00 : f32
    %28 = vector.broadcast %cst_17 : f32 to vector<16x32xf32>
    %29 = arith.maximumf %27, %28 : vector<16x32xf32>
    %c0_18 = arith.constant 0 : index
    %c0_19 = arith.constant 0 : index
    %c0_20 = arith.constant 0 : index
    %30 = vector.load %arg17[%c0_18, %c0_19, %c0_20] : memref<1x16x32xf32, #tpu.memory_space<vmem>>, vector<1x16x32xf32>
    %31 = vector.shape_cast %30 : vector<1x16x32xf32> to vector<16x32xf32>
    %32 = vector.shape_cast %29 : vector<16x32xf32> to vector<1x16x32xf32>
    tpu.vector_store %arg17[%c0_18, %c0_19, %c0_20], %32 {strides = array<i32>} : memref<1x16x32xf32, #tpu.memory_space<vmem>>, vector<1x16x32xf32>,
    %c0_21 = arith.constant 0 : index
    %c0_22 = arith.constant 0 : index
    %33 = vector.load %arg7[%c0_21, %c0_22] : memref<8x32xf32, #tpu.memory_space<vmem>>, vector<8x32xf32>
    %34 = arith.truncf %33 : vector<8x32xf32> to vector<8x32xbf16>
    %35 = arith.truncf %29 : vector<16x32xf32> to vector<16x32xbf16>
    %cst_23 = arith.constant dense<0.000000e+00> : vector<8x16xf32>
    %36 = tpu.matmul %34, %35, %cst_23 {dimension_numbers = #tpu.dot_dimension_numbers<[1], [1], [0], [0], [0, 0, 1, 0], [], []>} : vector<8x32xbf16>, vector<16x32xbf16>, vector<8x16xf32> -> vector<8x16xf32>
    %cst_24 = arith.constant 0.176776692 : f32
    %37 = vector.broadcast %cst_24 : f32 to vector<8x16xf32>
    %38 = arith.mulf %36, %37 : vector<8x16xf32>
    %cst_25 = arith.constant dense<0xFF800000> : vector<8xf32>
    %39 = vector.multi_reduction <maximumf>, %38, %cst_25 [1] : vector<8x16xf32> to vector<8xf32>
    %40 = vector.shape_cast %39 : vector<8xf32> to vector<8x1xf32>
    %41 = vector.broadcast %40 : vector<8x1xf32> to vector<8x16xf32>
    %42 = arith.subf %38, %41 : vector<8x16xf32>
    %43 = math.exp %42 : vector<8x16xf32>
    %cst_26 = arith.constant dense<0.000000e+00> : vector<8xf32>
    %44 = vector.multi_reduction <add>, %43, %cst_26 [1] : vector<8x16xf32> to vector<8xf32>
    %45 = vector.shape_cast %44 : vector<8xf32> to vector<8x1xf32>
    %46 = tpu.reciprocal %45 {approx = true} : vector<8x1xf32> -> vector<8x1xf32>
    %47 = vector.broadcast %46 : vector<8x1xf32> to vector<8x16xf32>
    %48 = arith.mulf %43, %47 : vector<8x16xf32>
    %49 = arith.truncf %48 : vector<8x16xf32> to vector<8x16xbf16>
    %50 = arith.truncf %29 : vector<16x32xf32> to vector<16x32xbf16>
    %cst_27 = arith.constant dense<0.000000e+00> : vector<8x32xf32>
    %51 = tpu.matmul %49, %50, %cst_27 {dimension_numbers = #tpu.dot_dimension_numbers<[1], [0], [0], [1], [0, 0, 1, 1], [], []>} : vector<8x16xbf16>, vector<16x32xbf16>, vector<8x32xf32> -> vector<8x32xf32>
    %52 = arith.addf %33, %51 : vector<8x32xf32>
    %c0_28 = arith.constant 0 : index
    %c0_29 = arith.constant 0 : index
    %53 = vector.load %arg8[%c0_28, %c0_29] : memref<32x32xf32, #tpu.memory_space<vmem>>, vector<32x32xf32>
    %54 = arith.truncf %52 : vector<8x32xf32> to vector<8x32xbf16>
    %55 = arith.truncf %53 : vector<32x32xf32> to vector<32x32xbf16>
    %cst_30 = arith.constant dense<0.000000e+00> : vector<8x32xf32>
    %56 = tpu.matmul %54, %55, %cst_30 {dimension_numbers = #tpu.dot_dimension_numbers<[1], [0], [0], [1], [0, 0, 1, 1], [], []>} : vector<8x32xbf16>, vector<32x32xbf16>, vector<8x32xf32> -> vector<8x32xf32>
    %c0_31 = arith.constant 0 : index
    %c0_32 = arith.constant 0 : index
    %57 = vector.load %arg9[%c0_31, %c0_32] : memref<1x32xf32, #tpu.memory_space<vmem>>, vector<1x32xf32>
    %58 = vector.broadcast %57 : vector<1x32xf32> to vector<8x32xf32>
    %59 = arith.addf %56, %58 : vector<8x32xf32>
    %cst_33 = arith.constant 0.000000e+00 : f32
    %60 = vector.broadcast %cst_33 : f32 to vector<8x32xf32>
    %61 = arith.maximumf %59, %60 : vector<8x32xf32>
    %62 = arith.truncf %61 : vector<8x32xf32> to vector<8x32xbf16>
    %63 = arith.truncf %29 : vector<16x32xf32> to vector<16x32xbf16>
    %cst_34 = arith.constant dense<0.000000e+00> : vector<8x16xf32>
    %64 = tpu.matmul %62, %63, %cst_34 {dimension_numbers = #tpu.dot_dimension_numbers<[1], [1], [0], [0], [0, 0, 1, 0], [], []>} : vector<8x32xbf16>, vector<16x32xbf16>, vector<8x16xf32> -> vector<8x16xf32>
    %cst_35 = arith.constant 0.176776692 : f32
    %65 = vector.broadcast %cst_35 : f32 to vector<8x16xf32>
    %66 = arith.mulf %64, %65 : vector<8x16xf32>
    %cst_36 = arith.constant dense<0xFF800000> : vector<8xf32>
    %67 = vector.multi_reduction <maximumf>, %66, %cst_36 [1] : vector<8x16xf32> to vector<8xf32>
    %68 = vector.shape_cast %67 : vector<8xf32> to vector<8x1xf32>
    %69 = vector.broadcast %68 : vector<8x1xf32> to vector<8x16xf32>
    %70 = arith.subf %66, %69 : vector<8x16xf32>
    %71 = math.exp %70 : vector<8x16xf32>
    %cst_37 = arith.constant dense<0.000000e+00> : vector<8xf32>
    %72 = vector.multi_reduction <add>, %71, %cst_37 [1] : vector<8x16xf32> to vector<8xf32>
    %73 = vector.shape_cast %72 : vector<8xf32> to vector<8x1xf32>
    %74 = tpu.reciprocal %73 {approx = true} : vector<8x1xf32> -> vector<8x1xf32>
    %75 = vector.broadcast %74 : vector<8x1xf32> to vector<8x16xf32>
    %76 = arith.mulf %71, %75 : vector<8x16xf32>
    %77 = arith.truncf %76 : vector<8x16xf32> to vector<8x16xbf16>
    %78 = arith.truncf %29 : vector<16x32xf32> to vector<16x32xbf16>
    %cst_38 = arith.constant dense<0.000000e+00> : vector<8x32xf32>
    %79 = tpu.matmul %77, %78, %cst_38 {dimension_numbers = #tpu.dot_dimension_numbers<[1], [0], [0], [1], [0, 0, 1, 1], [], []>} : vector<8x16xbf16>, vector<16x32xbf16>, vector<8x32xf32> -> vector<8x32xf32>
    %80 = arith.addf %61, %79 : vector<8x32xf32>
    %c0_39 = arith.constant 0 : index
    %c0_40 = arith.constant 0 : index
    %81 = vector.load %arg8[%c0_39, %c0_40] : memref<32x32xf32, #tpu.memory_space<vmem>>, vector<32x32xf32>
    %82 = arith.truncf %80 : vector<8x32xf32> to vector<8x32xbf16>
    %83 = arith.truncf %81 : vector<32x32xf32> to vector<32x32xbf16>
    %cst_41 = arith.constant dense<0.000000e+00> : vector<8x32xf32>
    %84 = tpu.matmul %82, %83, %cst_41 {dimension_numbers = #tpu.dot_dimension_numbers<[1], [0], [0], [1], [0, 0, 1, 1], [], []>} : vector<8x32xbf16>, vector<32x32xbf16>, vector<8x32xf32> -> vector<8x32xf32>
    %c0_42 = arith.constant 0 : index
    %c0_43 = arith.constant 0 : index
    %85 = vector.load %arg9[%c0_42, %c0_43] : memref<1x32xf32, #tpu.memory_space<vmem>>, vector<1x32xf32>
    %86 = vector.broadcast %85 : vector<1x32xf32> to vector<8x32xf32>
    %87 = arith.addf %84, %86 : vector<8x32xf32>
    %cst_44 = arith.constant 0.000000e+00 : f32
    %88 = vector.broadcast %cst_44 : f32 to vector<8x32xf32>
    %89 = arith.maximumf %87, %88 : vector<8x32xf32>
    %90 = arith.truncf %89 : vector<8x32xf32> to vector<8x32xbf16>
    %91 = arith.truncf %29 : vector<16x32xf32> to vector<16x32xbf16>
    %cst_45 = arith.constant dense<0.000000e+00> : vector<8x16xf32>
    %92 = tpu.matmul %90, %91, %cst_45 {dimension_numbers = #tpu.dot_dimension_numbers<[1], [1], [0], [0], [0, 0, 1, 0], [], []>} : vector<8x32xbf16>, vector<16x32xbf16>, vector<8x16xf32> -> vector<8x16xf32>
    %cst_46 = arith.constant 0.176776692 : f32
    %93 = vector.broadcast %cst_46 : f32 to vector<8x16xf32>
    %94 = arith.mulf %92, %93 : vector<8x16xf32>
    %cst_47 = arith.constant dense<0xFF800000> : vector<8xf32>
    %95 = vector.multi_reduction <maximumf>, %94, %cst_47 [1] : vector<8x16xf32> to vector<8xf32>
    %96 = vector.shape_cast %95 : vector<8xf32> to vector<8x1xf32>
    %97 = vector.broadcast %96 : vector<8x1xf32> to vector<8x16xf32>
    %98 = arith.subf %94, %97 : vector<8x16xf32>
    %99 = math.exp %98 : vector<8x16xf32>
    %cst_48 = arith.constant dense<0.000000e+00> : vector<8xf32>
    %100 = vector.multi_reduction <add>, %99, %cst_48 [1] : vector<8x16xf32> to vector<8xf32>
    %101 = vector.shape_cast %100 : vector<8xf32> to vector<8x1xf32>
    %102 = tpu.reciprocal %101 {approx = true} : vector<8x1xf32> -> vector<8x1xf32>
    %103 = vector.broadcast %102 : vector<8x1xf32> to vector<8x16xf32>
    %104 = arith.mulf %99, %103 : vector<8x16xf32>
    %105 = arith.truncf %104 : vector<8x16xf32> to vector<8x16xbf16>
    %106 = arith.truncf %29 : vector<16x32xf32> to vector<16x32xbf16>
    %cst_49 = arith.constant dense<0.000000e+00> : vector<8x32xf32>
    %107 = tpu.matmul %105, %106, %cst_49 {dimension_numbers = #tpu.dot_dimension_numbers<[1], [0], [0], [1], [0, 0, 1, 1], [], []>} : vector<8x16xbf16>, vector<16x32xbf16>, vector<8x32xf32> -> vector<8x32xf32>
    %108 = arith.addf %89, %107 : vector<8x32xf32>
    %c0_50 = arith.constant 0 : index
    %c0_51 = arith.constant 0 : index
    %109 = vector.load %arg8[%c0_50, %c0_51] : memref<32x32xf32, #tpu.memory_space<vmem>>, vector<32x32xf32>
    %110 = arith.truncf %108 : vector<8x32xf32> to vector<8x32xbf16>
    %111 = arith.truncf %109 : vector<32x32xf32> to vector<32x32xbf16>
    %cst_52 = arith.constant dense<0.000000e+00> : vector<8x32xf32>
    %112 = tpu.matmul %110, %111, %cst_52 {dimension_numbers = #tpu.dot_dimension_numbers<[1], [0], [0], [1], [0, 0, 1, 1], [], []>} : vector<8x32xbf16>, vector<32x32xbf16>, vector<8x32xf32> -> vector<8x32xf32>
    %c0_53 = arith.constant 0 : index
    %c0_54 = arith.constant 0 : index
    %113 = vector.load %arg9[%c0_53, %c0_54] : memref<1x32xf32, #tpu.memory_space<vmem>>, vector<1x32xf32>
    %114 = vector.broadcast %113 : vector<1x32xf32> to vector<8x32xf32>
    %115 = arith.addf %112, %114 : vector<8x32xf32>
    %cst_55 = arith.constant 0.000000e+00 : f32
    %116 = vector.broadcast %cst_55 : f32 to vector<8x32xf32>
    %117 = arith.maximumf %115, %116 : vector<8x32xf32>
    %c0_56 = arith.constant 0 : index
    %c0_57 = arith.constant 0 : index
    %c0_58 = arith.constant 0 : index
    %118 = vector.load %arg18[%c0_56, %c0_57, %c0_58] : memref<1x8x32xf32, #tpu.memory_space<vmem>>, vector<1x8x32xf32>
    %119 = vector.shape_cast %118 : vector<1x8x32xf32> to vector<8x32xf32>
    %120 = vector.shape_cast %117 : vector<8x32xf32> to vector<1x8x32xf32>
    tpu.vector_store %arg18[%c0_56, %c0_57, %c0_58], %120 {strides = array<i32>} : memref<1x8x32xf32, #tpu.memory_space<vmem>>, vector<1x8x32xf32>,
    %c0_59 = arith.constant 0 : index
    %c0_60 = arith.constant 0 : index
    %121 = vector.load %arg10[%c0_59, %c0_60] : memref<32x32xf32, #tpu.memory_space<vmem>>, vector<32x32xf32>
    %122 = arith.truncf %29 : vector<16x32xf32> to vector<16x32xbf16>
    %123 = arith.truncf %121 : vector<32x32xf32> to vector<32x32xbf16>
    %cst_61 = arith.constant dense<0.000000e+00> : vector<16x32xf32>
    %124 = tpu.matmul %122, %123, %cst_61 {dimension_numbers = #tpu.dot_dimension_numbers<[1], [0], [0], [1], [0, 0, 1, 1], [], []>} : vector<16x32xbf16>, vector<32x32xbf16>, vector<16x32xf32> -> vector<16x32xf32>
    %125 = arith.truncf %117 : vector<8x32xf32> to vector<8x32xbf16>
    %126 = arith.truncf %124 : vector<16x32xf32> to vector<16x32xbf16>
    %cst_62 = arith.constant dense<0.000000e+00> : vector<8x16xf32>
    %127 = tpu.matmul %125, %126, %cst_62 {dimension_numbers = #tpu.dot_dimension_numbers<[1], [1], [0], [0], [0, 0, 1, 0], [], []>} : vector<8x32xbf16>, vector<16x32xbf16>, vector<8x16xf32> -> vector<8x16xf32>
    %cst_63 = arith.constant 0.176776692 : f32
    %128 = vector.broadcast %cst_63 : f32 to vector<8x16xf32>
    %129 = arith.mulf %127, %128 : vector<8x16xf32>
    %c0_64 = arith.constant 0 : index
    %c0_65 = arith.constant 0 : index
    %130 = vector.load %arg11[%c0_64, %c0_65] : memref<32x11xf32, #tpu.memory_space<vmem>>, vector<32x11xf32>
    %131 = arith.truncf %117 : vector<8x32xf32> to vector<8x32xbf16>
    %132 = arith.truncf %130 : vector<32x11xf32> to vector<32x11xbf16>
    %cst_66 = arith.constant dense<0.000000e+00> : vector<8x11xf32>
    %133 = tpu.matmul %131, %132, %cst_66 {dimension_numbers = #tpu.dot_dimension_numbers<[1], [0], [0], [1], [0, 0, 1, 1], [], []>} : vector<8x32xbf16>, vector<32x11xbf16>, vector<8x11xf32> -> vector<8x11xf32>
    %c0_67 = arith.constant 0 : index
    %c0_68 = arith.constant 0 : index
    %134 = vector.load %arg12[%c0_67, %c0_68] : memref<1x11xf32, #tpu.memory_space<vmem>>, vector<1x11xf32>
    %135 = vector.broadcast %134 : vector<1x11xf32> to vector<8x11xf32>
    %136 = arith.addf %133, %135 : vector<8x11xf32>
    %137 = vector.extract_strided_slice %136 {offsets = [0, 10], sizes = [8, 1], strides = [1, 1]} : vector<8x11xf32> to vector<8x1xf32>
    %138 = tpu.concatenate %129, %137 in 1 : vector<8x16xf32>, vector<8x1xf32> -> vector<8x17xf32>
    %139 = arith.negf %138 : vector<8x17xf32>
    %140 = math.exp %139 : vector<8x17xf32>
    %cst_69 = arith.constant 1.000000e+00 : f32
    %141 = vector.broadcast %cst_69 : f32 to vector<8x17xf32>
    %142 = arith.addf %141, %140 : vector<8x17xf32>
    %143 = arith.divf %141, %142 : vector<8x17xf32>
    %c0_70 = arith.constant 0 : index
    %c0_71 = arith.constant 0 : index
    %c0_72 = arith.constant 0 : index
    %144 = vector.load %arg15[%c0_70, %c0_71, %c0_72] : memref<1x8x17xf32, #tpu.memory_space<vmem>>, vector<1x8x17xf32>
    %145 = vector.shape_cast %144 : vector<1x8x17xf32> to vector<8x17xf32>
    %146 = vector.shape_cast %143 : vector<8x17xf32> to vector<1x8x17xf32>
    tpu.vector_store %arg15[%c0_70, %c0_71, %c0_72], %146 {strides = array<i32>} : memref<1x8x17xf32, #tpu.memory_space<vmem>>, vector<1x8x17xf32>,
    %147 = vector.extract_strided_slice %136 {offsets = [0, 0], sizes = [8, 3], strides = [1, 1]} : vector<8x11xf32> to vector<8x3xf32>
    %c0_73 = arith.constant 0 : index
    %c0_74 = arith.constant 0 : index
    %148 = vector.load %arg13[%c0_73, %c0_74] : memref<1x3xf32, #tpu.memory_space<vmem>>, vector<1x3xf32>
    %149 = vector.broadcast %148 : vector<1x3xf32> to vector<8x3xf32>
    %150 = arith.mulf %147, %149 : vector<8x3xf32>
    %c0_75 = arith.constant 0 : index
    %c0_76 = arith.constant 0 : index
    %151 = vector.load %arg14[%c0_75, %c0_76] : memref<1x3xf32, #tpu.memory_space<vmem>>, vector<1x3xf32>
    %152 = vector.broadcast %151 : vector<1x3xf32> to vector<8x3xf32>
    %153 = arith.addf %150, %152 : vector<8x3xf32>
    %154 = vector.extract_strided_slice %136 {offsets = [0, 9], sizes = [8, 1], strides = [1, 1]} : vector<8x11xf32> to vector<8x1xf32>
    %cst_77 = arith.constant 0.000000e+00 : f32
    %155 = vector.broadcast %cst_77 : f32 to vector<8x1xf32>
    %156 = arith.cmpf ogt, %154, %155 : vector<8x1xf32>
    %157 = arith.extui %156 : vector<8x1xi1> to vector<8x1xi32>
    %158 = arith.sitofp %157 : vector<8x1xi32> to vector<8x1xf32>
    %159 = vector.extract_strided_slice %136 {offsets = [0, 3], sizes = [8, 6], strides = [1, 1]} : vector<8x11xf32> to vector<8x6xf32>
    %160 = tpu.concatenate %147, %153, %159, %158 in 1 : vector<8x3xf32>, vector<8x3xf32>, vector<8x6xf32>, vector<8x1xf32> -> vector<8x13xf32>
    %c0_78 = arith.constant 0 : index
    %c0_79 = arith.constant 0 : index
    %c0_80 = arith.constant 0 : index
    %161 = vector.load %arg16[%c0_78, %c0_79, %c0_80] : memref<1x8x13xf32, #tpu.memory_space<vmem>>, vector<1x8x13xf32>
    %162 = vector.shape_cast %161 : vector<1x8x13xf32> to vector<8x13xf32>
    %163 = vector.shape_cast %160 : vector<8x13xf32> to vector<1x8x13xf32>
    tpu.vector_store %arg16[%c0_78, %c0_79, %c0_80], %163 {strides = array<i32>} : memref<1x8x13xf32, #tpu.memory_space<vmem>>, vector<1x8x13xf32>,
    return
  }
  func.func @transform_0(%arg0: i32) -> (i32, i32, i32) {
    %c0_i32 = arith.constant 0 : i32
    %c0_i32_0 = arith.constant 0 : i32
    %c0_i32_1 = arith.constant 0 : i32
    return %arg0, %c0_i32, %c0_i32_0 : i32, i32, i32
  }
  func.func @transform_1(%arg0: i32) -> (i32, i32) {
    %c0_i32 = arith.constant 0 : i32
    %c0_i32_0 = arith.constant 0 : i32
    %c0_i32_1 = arith.constant 0 : i32
    return %c0_i32, %c0_i32_0 : i32, i32
  }
  func.func @transform_2(%arg0: i32) -> (i32, i32) {
    %c0_i32 = arith.constant 0 : i32
    %c0_i32_0 = arith.constant 0 : i32
    %c0_i32_1 = arith.constant 0 : i32
    return %c0_i32, %c0_i32_0 : i32, i32
  }
  func.func @transform_3(%arg0: i32) -> (i32, i32) {
    %c0_i32 = arith.constant 0 : i32
    %c0_i32_0 = arith.constant 0 : i32
    %c0_i32_1 = arith.constant 0 : i32
    return %c0_i32, %c0_i32_0 : i32, i32
  }
  func.func @transform_4(%arg0: i32) -> (i32, i32) {
    %c0_i32 = arith.constant 0 : i32
    %c0_i32_0 = arith.constant 0 : i32
    %c0_i32_1 = arith.constant 0 : i32
    return %c0_i32, %c0_i32_0 : i32, i32
  }
  func.func @transform_5(%arg0: i32) -> (i32, i32) {
    %c0_i32 = arith.constant 0 : i32
    %c0_i32_0 = arith.constant 0 : i32
    %c0_i32_1 = arith.constant 0 : i32
    return %c0_i32, %c0_i32_0 : i32, i32
  }
  func.func @transform_6(%arg0: i32) -> (i32, i32) {
    %c0_i32 = arith.constant 0 : i32
    %c0_i32_0 = arith.constant 0 : i32
    %c0_i32_1 = arith.constant 0 : i32
    return %c0_i32, %c0_i32_0 : i32, i32
  }
  func.func @transform_7(%arg0: i32) -> (i32, i32) {
    %c0_i32 = arith.constant 0 : i32
    %c0_i32_0 = arith.constant 0 : i32
    %c0_i32_1 = arith.constant 0 : i32
    return %c0_i32, %c0_i32_0 : i32, i32
  }
  func.func @transform_8(%arg0: i32) -> (i32, i32) {
    %c0_i32 = arith.constant 0 : i32
    %c0_i32_0 = arith.constant 0 : i32
    %c0_i32_1 = arith.constant 0 : i32
    return %c0_i32, %c0_i32_0 : i32, i32
  }
  func.func @transform_9(%arg0: i32) -> (i32, i32) {
    %c0_i32 = arith.constant 0 : i32
    %c0_i32_0 = arith.constant 0 : i32
    %c0_i32_1 = arith.constant 0 : i32
    return %c0_i32, %c0_i32_0 : i32, i32
  }
  func.func @transform_10(%arg0: i32) -> (i32, i32) {
    %c0_i32 = arith.constant 0 : i32
    %c0_i32_0 = arith.constant 0 : i32
    %c0_i32_1 = arith.constant 0 : i32
    return %c0_i32, %c0_i32_0 : i32, i32
  }
  func.func @transform_11(%arg0: i32) -> (i32, i32) {
    %c0_i32 = arith.constant 0 : i32
    %c0_i32_0 = arith.constant 0 : i32
    %c0_i32_1 = arith.constant 0 : i32
    return %c0_i32, %c0_i32_0 : i32, i32
  }
  func.func @transform_12(%arg0: i32) -> (i32, i32) {
    %c0_i32 = arith.constant 0 : i32
    %c0_i32_0 = arith.constant 0 : i32
    %c0_i32_1 = arith.constant 0 : i32
    return %c0_i32, %c0_i32_0 : i32, i32
  }
  func.func @transform_13(%arg0: i32) -> (i32, i32) {
    %c0_i32 = arith.constant 0 : i32
    %c0_i32_0 = arith.constant 0 : i32
    %c0_i32_1 = arith.constant 0 : i32
    return %c0_i32, %c0_i32_0 : i32, i32
  }
  func.func @transform_14(%arg0: i32) -> (i32, i32, i32) {
    %c0_i32 = arith.constant 0 : i32
    %c0_i32_0 = arith.constant 0 : i32
    %c0_i32_1 = arith.constant 0 : i32
    return %arg0, %c0_i32, %c0_i32_0 : i32, i32, i32
  }
  func.func @transform_15(%arg0: i32) -> (i32, i32, i32) {
    %c0_i32 = arith.constant 0 : i32
    %c0_i32_0 = arith.constant 0 : i32
    %c0_i32_1 = arith.constant 0 : i32
    return %arg0, %c0_i32, %c0_i32_0 : i32, i32, i32
  }
  func.func @transform_16(%arg0: i32) -> (i32, i32, i32) {
    %c0_i32 = arith.constant 0 : i32
    %c0_i32_0 = arith.constant 0 : i32
    %c0_i32_1 = arith.constant 0 : i32
    return %arg0, %c0_i32, %c0_i32_0 : i32, i32, i32
  }
  func.func @transform_17(%arg0: i32) -> (i32, i32, i32) {
    %c0_i32 = arith.constant 0 : i32
    %c0_i32_0 = arith.constant 0 : i32
    %c0_i32_1 = arith.constant 0 : i32
    return %arg0, %c0_i32, %c0_i32_0 : i32, i32, i32
  }
}

</mosaic_0001>

<llo_original>
// kernel: pflow_fused_forward.1
$region0: #{pflow_fused_forward.1}
  #allocation0 [shape = 'u32[]', space=smem, size = 0x4, offset = 0x4, fixed_abs, tag = 'smem constant byte address 0x4 - core index']
  #allocation1 [shape = 'u32[144,128]{1,0:T(1,128)}', space=vmem, size = 0x12000, scoped, tag = 'internal scratch']
  %s0 = inlined_call_operand.vmem [shape: f32[2,16,8], index: 0, kind: input, shape index: {}]
  %s1 = inlined_call_operand.hbm [shape: f32[8,32], index: 1, kind: input, shape index: {}]
  %s2 = inlined_call_operand.vmem [shape: f32[1,32], index: 2, kind: input, shape index: {}]
  %s3 = inlined_call_operand.vmem [shape: f32[32,32], index: 3, kind: input, shape index: {}]
  %s4 = inlined_call_operand.vmem [shape: f32[32,32], index: 4, kind: input, shape index: {}]
  %s5 = inlined_call_operand.vmem [shape: f32[1,32], index: 5, kind: input, shape index: {}]
  %s6 = inlined_call_operand.hbm [shape: f32[8,32], index: 6, kind: input, shape index: {}]
  %s7 = inlined_call_operand.vmem [shape: f32[32,32], index: 7, kind: input, shape index: {}]
  %s8 = inlined_call_operand.hbm [shape: f32[1,32], index: 8, kind: input, shape index: {}]
  %s9 = inlined_call_operand.vmem [shape: f32[32,32], index: 9, kind: input, shape index: {}]
  %s10 = inlined_call_operand.vmem [shape: f32[32,11], index: 10, kind: input, shape index: {}]
  %s11 = inlined_call_operand.hbm [shape: f32[1,11], index: 11, kind: input, shape index: {}]
  %s12 = inlined_call_operand.vmem [shape: f32[1,3], index: 12, kind: input, shape index: {}]
  %s13 = inlined_call_operand.hbm [shape: f32[1,3], index: 13, kind: input, shape index: {}]
  %s14 = inlined_call_operand.hbm [shape: f32[2,8,17], index: 14, kind: output, shape index: {0}]
  %s15 = inlined_call_operand.hbm [shape: f32[2,8,13], index: 15, kind: output, shape index: {1}]
  %s16 = inlined_call_operand.hbm [shape: f32[2,16,32], index: 16, kind: output, shape index: {2}]
  %s17 = inlined_call_operand.hbm [shape: f32[2,8,32], index: 17, kind: output, shape index: {3}]
  %18 = xla_tuple %s14, %s15, %s16, %s17
  %s19 = sld [smem:[#allocation0]]
  $region133: #{pflow_fused_forward.1} parent=0
    _
  %s21 = ssub.s32 1, %s19
  %s22 = scalar_select 0, %s21, %s19
  $region1: #{pflow_fused_forward.1} parent=0
    #allocation2 [shape = 'u8[4096]{0}', space=vmem, size = 0x1000, scoped, tag = 'input window, operand 1, single buffered']
    #allocation3 [shape = 's32[2]{0}', space=sflag, size = 0x8, scoped, tag = 'scoped memory for pflow_fused_forward.1']
    #allocation4 [shape = 's32[2]{0}', space=sflag, size = 0x8, scoped, tag = 'scoped memory for pflow_fused_forward.1']
    #allocation5 [shape = 'u8[4096]{0}', space=vmem, size = 0x1000, scoped, tag = 'input window, operand 6, single buffered']
    #allocation6 [shape = 's32[1]{0}', space=sflag, size = 0x4, scoped, tag = 'scoped memory for pflow_fused_forward.1']
    #allocation7 [shape = 'u8[512]{0}', space=vmem, size = 0x400, scoped, tag = 'input window, operand 8, single buffered']
    #allocation8 [shape = 'u8[512]{0}', space=vmem, size = 0x400, scoped, tag = 'input window, operand 11, single buffered']
    #allocation9 [shape = 's32[1]{0}', space=sflag, size = 0x4, scoped, tag = 'scoped memory for pflow_fused_forward.1']
    #allocation10 [shape = 'u8[512]{0}', space=vmem, size = 0x400, scoped, tag = 'input window, operand 13, single buffered']
    #allocation11 [shape = 'u8[8192]{0}', space=vmem, size = 0x2000, scoped, tag = 'output window, operand 0']
    #allocation12 [shape = 'u8[8192]{0}', space=vmem, size = 0x2000, scoped, tag = 'output window, operand 1']
    #allocation13 [shape = 's32[2]{0}', space=sflag, size = 0x8, scoped, tag = 'scoped memory for pflow_fused_forward.1']
    #allocation14 [shape = 'u8[16384]{0}', space=vmem, size = 0x4000, scoped, tag = 'output window, operand 2']
    #allocation15 [shape = 'u8[8192]{0}', space=vmem, size = 0x2000, scoped, tag = 'output window, operand 3']
    #allocation16 [shape = 's32[2]{0}', space=sflag, size = 0x8, scoped, tag = 'scoped memory for pflow_fused_forward.1']
    %23 = vsyncpa [#allocation3], 0
    %24 = vsyncpa [#allocation6], 0
    %25 = vsyncpa [#allocation9], 0
    %26 = vsyncpa [#allocation4], 0
    %s27 = scalar_lea.sflag [#allocation4], 1
    %28 = vsyncpa %s27, 0
    %29 = vsyncpa [#allocation13], 0
    %s30 = scalar_lea.sflag [#allocation13], 1
    %31 = vsyncpa %s30, 0
    %32 = vsyncpa [#allocation16], 0
    %s33 = scalar_lea.sflag [#allocation16], 1
    %34 = vsyncpa %s33, 0
    loop: start=0, step=1, limit=4
    $region2: #{pflow_fused_forward.1} parent=1 // loop_pre_header
      _
    $region3: #{pflow_fused_forward.1} parent=1 // loop_header
      %s36 = sphi 0, %s40
      %p37 = scmp.ge.s32.totalorder %s36, 4
      %s46 = sphi 0, %s48
      %s49 = sphi 0, %s46
      %s50 = sphi 0, %s49
      %s66 = sphi 0, %s50
      %s70 = sphi 0, %s70
      %s72 = sphi 0, %s70
      %s73 = sphi 0, %s72
      %s87 = sphi 0, %s73
      %s91 = sphi 0, %s91
      %s93 = sphi 0, %s91
      %s94 = sphi 0, %s93
      %s108 = sphi 0, %s94
      %s112 = sphi 0, %s112
      %s114 = sphi 0, %s112
      %s115 = sphi 0, %s114
      %s129 = sphi 0, %s115
      %s133 = sphi 0, %s133
      %s135 = sphi 0, %s133
      %s136 = sphi 0, %s135
      %s150 = sphi 0, %s136
      %s154 = sphi 0, %s154
      %s156 = sphi 0, %s154
      %s157 = sphi 0, %s156
      %s171 = sphi 0, %s157
      %s175 = sphi 0, %s175
      %s177 = sphi 0, %s175
      %s178 = sphi 0, %s177
      %s192 = sphi 0, %s178
      %s196 = sphi 0, %s196
      %s198 = sphi 0, %s196
      %s199 = sphi 0, %s198
      %s213 = sphi 0, %s199
      %s217 = sphi 0, %s217
      %s219 = sphi 0, %s217
      %s220 = sphi 0, %s219
      %s234 = sphi 0, %s220
      %s238 = sphi 0, %s238
      %s240 = sphi 0, %s238
      %s241 = sphi 0, %s240
      %s255 = sphi 0, %s241
      %s259 = sphi 0, %s259
      %s261 = sphi 0, %s259
      %s262 = sphi 0, %s261
      %s276 = sphi 0, %s262
      %s280 = sphi 0, %s280
      %s282 = sphi 0, %s280
      %s283 = sphi 0, %s282
      %s297 = sphi 0, %s283
      %s301 = sphi 0, %s301
      %s303 = sphi 0, %s301
      %s304 = sphi 0, %s303
      %s318 = sphi 0, %s304
      %s322 = sphi 0, %s322
      %s324 = sphi 0, %s322
      %s325 = sphi 0, %s324
      %s339 = sphi 0, %s325
      %s345 = sphi 0, %s347
      %s348 = sphi 0, %s345
      %s349 = sphi 0, %s348
      %s365 = sphi 0, %s349
      %s371 = sphi 0, %s373
      %s374 = sphi 0, %s371
      %s375 = sphi 0, %s374
      %s391 = sphi 0, %s375
      %s397 = sphi 0, %s399
      %s400 = sphi 0, %s397
      %s401 = sphi 0, %s400
      %s417 = sphi 0, %s401
      %s423 = sphi 0, %s425
      %s426 = sphi 0, %s423
      %s427 = sphi 0, %s426
      %s443 = sphi 0, %s427
    $region4: #{pflow_fused_forward.1} parent=1 // loop_header_branch
      %39 = sbr.rel (%p37) target = $region8
    $region5: #{pflow_fused_forward.1} parent=1 // loop_body
      %s41 = ssub.s32 %s36, 1
      %s42 = ssub.s32 %s36, 2
      %s43 = sadd.s32 %s36, 1
      %s44 = ssub.s32 %s36, %s43
      %p45 = scmp.eq.s32.totalorder %s44, 0
      %s47 = sadd.s32 %s46, 1
      %s48 = scalar_select %p45, %s46, %s47
      %p51 = pneg %p45
      %p52 = scmp.eq.s32.totalorder %s36, 1
      %p53 = por %p51, %p52
      %p54 = scmp.ne.s32.totalorder %s46, %s49
      %p55 = scmp.eq.s32.totalorder %s36, 0
      %p56 = por %p54, %p55
      %p57 = scmp.ne.s32.totalorder %s46, %s49
      %p58 = scmp.eq.s32.totalorder %s41, 1
      %p59 = por %p57, %p58
      %p60 = scmp.ne.s32.totalorder %s49, %s50
      %p61 = scmp.eq.s32.totalorder %s41, 0
      %p62 = por %p60, %p61
      %p63 = scmp.ne.s32.totalorder %s49, %s50
      %p64 = scmp.eq.s32.totalorder %s42, 1
      %p65 = por %p63, %p64
      %p67 = scmp.ne.s32.totalorder %s50, %s66
      %p68 = scmp.eq.s32.totalorder %s42, 0
      %p69 = por %p67, %p68
      %s71 = sadd.s32 %s70, 1
      %p74 = scmp.eq.s32.totalorder %s36, 1
      %p75 = scmp.ne.s32.totalorder %s70, %s72
      %p76 = scmp.eq.s32.totalorder %s36, 0
      %p77 = por %p75, %p76
      %p78 = scmp.ne.s32.totalorder %s70, %s72
      %p79 = scmp.eq.s32.totalorder %s41, 1
      %p80 = por %p78, %p79
      %p81 = scmp.ne.s32.totalorder %s72, %s73
      %p82 = scmp.eq.s32.totalorder %s41, 0
      %p83 = por %p81, %p82
      %p84 = scmp.ne.s32.totalorder %s72, %s73
      %p85 = scmp.eq.s32.totalorder %s42, 1
      %p86 = por %p84, %p85
      %p88 = scmp.ne.s32.totalorder %s73, %s87
      %p89 = scmp.eq.s32.totalorder %s42, 0
      %p90 = por %p88, %p89
      %s92 = sadd.s32 %s91, 1
      %p95 = scmp.eq.s32.totalorder %s36, 1
      %p96 = scmp.ne.s32.totalorder %s91, %s93
      %p97 = scmp.eq.s32.totalorder %s36, 0
      %p98 = por %p96, %p97
      %p99 = scmp.ne.s32.totalorder %s91, %s93
      %p100 = scmp.eq.s32.totalorder %s41, 1
      %p101 = por %p99, %p100
      %p102 = scmp.ne.s32.totalorder %s93, %s94
      %p103 = scmp.eq.s32.totalorder %s41, 0
      %p104 = por %p102, %p103
      %p105 = scmp.ne.s32.totalorder %s93, %s94
      %p106 = scmp.eq.s32.totalorder %s42, 1
      %p107 = por %p105, %p106
      %p109 = scmp.ne.s32.totalorder %s94, %s108
      %p110 = scmp.eq.s32.totalorder %s42, 0
      %p111 = por %p109, %p110
      %s113 = sadd.s32 %s112, 1
      %p116 = scmp.eq.s32.totalorder %s36, 1
      %p117 = scmp.ne.s32.totalorder %s112, %s114
      %p118 = scmp.eq.s32.totalorder %s36, 0
      %p119 = por %p117, %p118
      %p120 = scmp.ne.s32.totalorder %s112, %s114
      %p121 = scmp.eq.s32.totalorder %s41, 1
      %p122 = por %p120, %p121
      %p123 = scmp.ne.s32.totalorder %s114, %s115
      %p124 = scmp.eq.s32.totalorder %s41, 0
      %p125 = por %p123, %p124
      %p126 = scmp.ne.s32.totalorder %s114, %s115
      %p127 = scmp.eq.s32.totalorder %s42, 1
      %p128 = por %p126, %p127
      %p130 = scmp.ne.s32.totalorder %s115, %s129
      %p131 = scmp.eq.s32.totalorder %s42, 0
      %p132 = por %p130, %p131
      %s134 = sadd.s32 %s133, 1
      %p137 = scmp.eq.s32.totalorder %s36, 1
      %p138 = scmp.ne.s32.totalorder %s133, %s135
      %p139 = scmp.eq.s32.totalorder %s36, 0
      %p140 = por %p138, %p139
      %p141 = scmp.ne.s32.totalorder %s133, %s135
      %p142 = scmp.eq.s32.totalorder %s41, 1
      %p143 = por %p141, %p142
      %p144 = scmp.ne.s32.totalorder %s135, %s136
      %p145 = scmp.eq.s32.totalorder %s41, 0
      %p146 = por %p144, %p145
      %p147 = scmp.ne.s32.totalorder %s135, %s136
      %p148 = scmp.eq.s32.totalorder %s42, 1
      %p149 = por %p147, %p148
      %p151 = scmp.ne.s32.totalorder %s136, %s150
      %p152 = scmp.eq.s32.totalorder %s42, 0
      %p153 = por %p151, %p152
      %s155 = sadd.s32 %s154, 1
      %p158 = scmp.eq.s32.totalorder %s36, 1
      %p159 = scmp.ne.s32.totalorder %s154, %s156
      %p160 = scmp.eq.s32.totalorder %s36, 0
      %p161 = por %p159, %p160
      %p162 = scmp.ne.s32.totalorder %s154, %s156
      %p163 = scmp.eq.s32.totalorder %s41, 1
      %p164 = por %p162, %p163
      %p165 = scmp.ne.s32.totalorder %s156, %s157
      %p166 = scmp.eq.s32.totalorder %s41, 0
      %p167 = por %p165, %p166
      %p168 = scmp.ne.s32.totalorder %s156, %s157
      %p169 = scmp.eq.s32.totalorder %s42, 1
      %p170 = por %p168, %p169
      %p172 = scmp.ne.s32.totalorder %s157, %s171
      %p173 = scmp.eq.s32.totalorder %s42, 0
      %p174 = por %p172, %p173
      %s176 = sadd.s32 %s175, 1
      %p179 = scmp.eq.s32.totalorder %s36, 1
      %p180 = scmp.ne.s32.totalorder %s175, %s177
      %p181 = scmp.eq.s32.totalorder %s36, 0
      %p182 = por %p180, %p181
      %p183 = scmp.ne.s32.totalorder %s175, %s177
      %p184 = scmp.eq.s32.totalorder %s41, 1
      %p185 = por %p183, %p184
      %p186 = scmp.ne.s32.totalorder %s177, %s178
      %p187 = scmp.eq.s32.totalorder %s41, 0
      %p188 = por %p186, %p187
      %p189 = scmp.ne.s32.totalorder %s177, %s178
      %p190 = scmp.eq.s32.totalorder %s42, 1
      %p191 = por %p189, %p190
      %p193 = scmp.ne.s32.totalorder %s178, %s192
      %p194 = scmp.eq.s32.totalorder %s42, 0
      %p195 = por %p193, %p194
      %s197 = sadd.s32 %s196, 1
      %p200 = scmp.eq.s32.totalorder %s36, 1
      %p201 = scmp.ne.s32.totalorder %s196, %s198
      %p202 = scmp.eq.s32.totalorder %s36, 0
      %p203 = por %p201, %p202
      %p204 = scmp.ne.s32.totalorder %s196, %s198
      %p205 = scmp.eq.s32.totalorder %s41, 1
      %p206 = por %p204, %p205
      %p207 = scmp.ne.s32.totalorder %s198, %s199
      %p208 = scmp.eq.s32.totalorder %s41, 0
      %p209 = por %p207, %p208
      %p210 = scmp.ne.s32.totalorder %s198, %s199
      %p211 = scmp.eq.s32.totalorder %s42, 1
      %p212 = por %p210, %p211
      %p214 = scmp.ne.s32.totalorder %s199, %s213
      %p215 = scmp.eq.s32.totalorder %s42, 0
      %p216 = por %p214, %p215
      %s218 = sadd.s32 %s217, 1
      %p221 = scmp.eq.s32.totalorder %s36, 1
      %p222 = scmp.ne.s32.totalorder %s217, %s219
      %p223 = scmp.eq.s32.totalorder %s36, 0
      %p224 = por %p222, %p223
      %p225 = scmp.ne.s32.totalorder %s217, %s219
      %p226 = scmp.eq.s32.totalorder %s41, 1
      %p227 = por %p225, %p226
      %p228 = scmp.ne.s32.totalorder %s219, %s220
      %p229 = scmp.eq.s32.totalorder %s41, 0
      %p230 = por %p228, %p229
      %p231 = scmp.ne.s32.totalorder %s219, %s220
      %p232 = scmp.eq.s32.totalorder %s42, 1
      %p233 = por %p231, %p232
      %p235 = scmp.ne.s32.totalorder %s220, %s234
      %p236 = scmp.eq.s32.totalorder %s42, 0
      %p237 = por %p235, %p236
      %s239 = sadd.s32 %s238, 1
      %p242 = scmp.eq.s32.totalorder %s36, 1
      %p243 = scmp.ne.s32.totalorder %s238, %s240
      %p244 = scmp.eq.s32.totalorder %s36, 0
      %p245 = por %p243, %p244
      %p246 = scmp.ne.s32.totalorder %s238, %s240
      %p247 = scmp.eq.s32.totalorder %s41, 1
      %p248 = por %p246, %p247
      %p249 = scmp.ne.s32.totalorder %s240, %s241
      %p250 = scmp.eq.s32.totalorder %s41, 0
      %p251 = por %p249, %p250
      %p252 = scmp.ne.s32.totalorder %s240, %s241
      %p253 = scmp.eq.s32.totalorder %s42, 1
      %p254 = por %p252, %p253
      %p256 = scmp.ne.s32.totalorder %s241, %s255
      %p257 = scmp.eq.s32.totalorder %s42, 0
      %p258 = por %p256, %p257
      %s260 = sadd.s32 %s259, 1
      %p263 = scmp.eq.s32.totalorder %s36, 1
      %p264 = scmp.ne.s32.totalorder %s259, %s261
      %p265 = scmp.eq.s32.totalorder %s36, 0
      %p266 = por %p264, %p265
      %p267 = scmp.ne.s32.totalorder %s259, %s261
      %p268 = scmp.eq.s32.totalorder %s41, 1
      %p269 = por %p267, %p268
      %p270 = scmp.ne.s32.totalorder %s261, %s262
      %p271 = scmp.eq.s32.totalorder %s41, 0
      %p272 = por %p270, %p271
      %p273 = scmp.ne.s32.totalorder %s261, %s262
      %p274 = scmp.eq.s32.totalorder %s42, 1
      %p275 = por %p273, %p274
      %p277 = scmp.ne.s32.totalorder %s262, %s276
      %p278 = scmp.eq.s32.totalorder %s42, 0
      %p279 = por %p277, %p278
      %s281 = sadd.s32 %s280, 1
      %p284 = scmp.eq.s32.totalorder %s36, 1
      %p285 = scmp.ne.s32.totalorder %s280, %s282
      %p286 = scmp.eq.s32.totalorder %s36, 0
      %p287 = por %p285, %p286
      %p288 = scmp.ne.s32.totalorder %s280, %s282
      %p289 = scmp.eq.s32.totalorder %s41, 1
      %p290 = por %p288, %p289
      %p291 = scmp.ne.s32.totalorder %s282, %s283
      %p292 = scmp.eq.s32.totalorder %s41, 0
      %p293 = por %p291, %p292
      %p294 = scmp.ne.s32.totalorder %s282, %s283
      %p295 = scmp.eq.s32.totalorder %s42, 1
      %p296 = por %p294, %p295
      %p298 = scmp.ne.s32.totalorder %s283, %s297
      %p299 = scmp.eq.s32.totalorder %s42, 0
      %p300 = por %p298, %p299
      %s302 = sadd.s32 %s301, 1
      %p305 = scmp.eq.s32.totalorder %s36, 1
      %p306 = scmp.ne.s32.totalorder %s301, %s303
      %p307 = scmp.eq.s32.totalorder %s36, 0
      %p308 = por %p306, %p307
      %p309 = scmp.ne.s32.totalorder %s301, %s303
      %p310 = scmp.eq.s32.totalorder %s41, 1
      %p311 = por %p309, %p310
      %p312 = scmp.ne.s32.totalorder %s303, %s304
      %p313 = scmp.eq.s32.totalorder %s41, 0
      %p314 = por %p312, %p313
      %p315 = scmp.ne.s32.totalorder %s303, %s304
      %p316 = scmp.eq.s32.totalorder %s42, 1
      %p317 = por %p315, %p316
      %p319 = scmp.ne.s32.totalorder %s304, %s318
      %p320 = scmp.eq.s32.totalorder %s42, 0
      %p321 = por %p319, %p320
      %s323 = sadd.s32 %s322, 1
      %p326 = scmp.eq.s32.totalorder %s36, 1
      %p327 = scmp.ne.s32.totalorder %s322, %s324
      %p328 = scmp.eq.s32.totalorder %s36, 0
      %p329 = por %p327, %p328
      %p330 = scmp.ne.s32.totalorder %s322, %s324
      %p331 = scmp.eq.s32.totalorder %s41, 1
      %p332 = por %p330, %p331
      %p333 = scmp.ne.s32.totalorder %s324, %s325
      %p334 = scmp.eq.s32.totalorder %s41, 0
      %p335 = por %p333, %p334
      %p336 = scmp.ne.s32.totalorder %s324, %s325
      %p337 = scmp.eq.s32.totalorder %s42, 1
      %p338 = por %p336, %p337
      %p340 = scmp.ne.s32.totalorder %s325, %s339
      %p341 = scmp.eq.s32.totalorder %s42, 0
      %p342 = por %p340, %p341
      %s343 = ssub.s32 %s36, %s43
      %p344 = scmp.eq.s32.totalorder %s343, 0
      %s346 = sadd.s32 %s345, 1
      %s347 = scalar_select %p344, %s345, %s346
      %p350 = pneg %p344
      %p351 = scmp.eq.s32.totalorder %s36, 1
      %p352 = por %p350, %p351
      %p353 = scmp.ne.s32.totalorder %s345, %s348
      %p354 = scmp.eq.s32.totalorder %s36, 0
      %p355 = por %p353, %p354
      %p356 = scmp.ne.s32.totalorder %s345, %s348
      %p357 = scmp.eq.s32.totalorder %s41, 1
      %p358 = por %p356, %p357
      %p359 = scmp.ne.s32.totalorder %s348, %s349
      %p360 = scmp.eq.s32.totalorder %s41, 0
      %p361 = por %p359, %p360
      %p362 = scmp.ne.s32.totalorder %s348, %s349
      %p363 = scmp.eq.s32.totalorder %s42, 1
      %p364 = por %p362, %p363
      %p366 = scmp.ne.s32.totalorder %s349, %s365
      %p367 = scmp.eq.s32.totalorder %s42, 0
      %p368 = por %p366, %p367
      %s369 = ssub.s32 %s36, %s43
      %p370 = scmp.eq.s32.totalorder %s369, 0
      %s372 = sadd.s32 %s371, 1
      %s373 = scalar_select %p370, %s371, %s372
      %p376 = pneg %p370
      %p377 = scmp.eq.s32.totalorder %s36, 1
      %p378 = por %p376, %p377
      %p379 = scmp.ne.s32.totalorder %s371, %s374
      %p380 = scmp.eq.s32.totalorder %s36, 0
      %p381 = por %p379, %p380
      %p382 = scmp.ne.s32.totalorder %s371, %s374
      %p383 = scmp.eq.s32.totalorder %s41, 1
      %p384 = por %p382, %p383
      %p385 = scmp.ne.s32.totalorder %s374, %s375
      %p386 = scmp.eq.s32.totalorder %s41, 0
      %p387 = por %p385, %p386
      %p388 = scmp.ne.s32.totalorder %s374, %s375
      %p389 = scmp.eq.s32.totalorder %s42, 1
      %p390 = por %p388, %p389
      %p392 = scmp.ne.s32.totalorder %s375, %s391
      %p393 = scmp.eq.s32.totalorder %s42, 0
      %p394 = por %p392, %p393
      %s395 = ssub.s32 %s36, %s43
      %p396 = scmp.eq.s32.totalorder %s395, 0
      %s398 = sadd.s32 %s397, 1
      %s399 = scalar_select %p396, %s397, %s398
      %p402 = pneg %p396
      %p403 = scmp.eq.s32.totalorder %s36, 1
      %p404 = por %p402, %p403
      %p405 = scmp.ne.s32.totalorder %s397, %s400
      %p406 = scmp.eq.s32.totalorder %s36, 0
      %p407 = por %p405, %p406
      %p408 = scmp.ne.s32.totalorder %s397, %s400
      %p409 = scmp.eq.s32.totalorder %s41, 1
      %p410 = por %p408, %p409
      %p411 = scmp.ne.s32.totalorder %s400, %s401
      %p412 = scmp.eq.s32.totalorder %s41, 0
      %p413 = por %p411, %p412
      %p414 = scmp.ne.s32.totalorder %s400, %s401
      %p415 = scmp.eq.s32.totalorder %s42, 1
      %p416 = por %p414, %p415
      %p418 = scmp.ne.s32.totalorder %s401, %s417
      %p419 = scmp.eq.s32.totalorder %s42, 0
      %p420 = por %p418, %p419
      %s421 = ssub.s32 %s36, %s43
      %p422 = scmp.eq.s32.totalorder %s421, 0
      %s424 = sadd.s32 %s423, 1
      %s425 = scalar_select %p422, %s423, %s424
      %p428 = pneg %p422
      %p429 = scmp.eq.s32.totalorder %s36, 1
      %p430 = por %p428, %p429
      %p431 = scmp.ne.s32.totalorder %s423, %s426
      %p432 = scmp.eq.s32.totalorder %s36, 0
      %p433 = por %p431, %p432
      %p434 = scmp.ne.s32.totalorder %s423, %s426
      %p435 = scmp.eq.s32.totalorder %s41, 1
      %p436 = por %p434, %p435
      %p437 = scmp.ne.s32.totalorder %s426, %s427
      %p438 = scmp.eq.s32.totalorder %s41, 0
      %p439 = por %p437, %p438
      %p440 = scmp.ne.s32.totalorder %s426, %s427
      %p441 = scmp.eq.s32.totalorder %s42, 1
      %p442 = por %p440, %p441
      %p444 = scmp.ne.s32.totalorder %s427, %s443
      %p445 = scmp.eq.s32.totalorder %s42, 0
      %p446 = por %p444, %p445
      %p447 = scmp.le.s32.totalorder 1, %s36
      %p448 = scmp.lt.s32.totalorder %s36, 3
      %p449 = pnand %p447, %p448
      %p450 = pneg %p449
      // Predicated region
      $region9: #{pflow_fused_forward.1} parent=5 // pred_check
        _
      $region10: #{pflow_fused_forward.1} parent=5 // pred_check_branch
        %452 = sbr.rel (%p449) target = $region12
      $region11: #{pflow_fused_forward.1} parent=5 // pred_region
        %s453 = ssub.s32 %s36, 1
        // Predicated region
        $region13: #{pflow_fused_forward.1} parent=11 // pred_check
          %p454 = pneg %p83
        $region14: #{pflow_fused_forward.1} parent=11 // pred_check_branch
          %456 = sbr.rel (%p454) target = $region16
        $region15: #{pflow_fused_forward.1} parent=11 // pred_region
          %s458 = ssub.s32 128, 128
          %459 = vsyncadd [#allocation3], %s458
          %s461 = sshll.u32 [#allocation2], 4
          %s462 = int_to_ptr.vmem [resolvable:$true] %s461
          %464 = dma.hbm_to_vmem [thread:$0]  %s1, 128, %s462, [#allocation3]
        $region16: #{pflow_fused_forward.1} parent=11 // pred_fallthru
          _
        // Predicated region
        $region17: #{pflow_fused_forward.1} parent=11 // pred_check
          %p465 = pneg %p104
        $region18: #{pflow_fused_forward.1} parent=11 // pred_check_branch
          %467 = sbr.rel (%p465) target = $region20
        $region19: #{pflow_fused_forward.1} parent=11 // pred_region
          _
        $region20: #{pflow_fused_forward.1} parent=11 // pred_fallthru
          _
        // Predicated region
        $region21: #{pflow_fused_forward.1} parent=11 // pred_check
          %p468 = pneg %p125
        $region22: #{pflow_fused_forward.1} parent=11 // pred_check_branch
          %470 = sbr.rel (%p468) target = $region24
        $region23: #{pflow_fused_forward.1} parent=11 // pred_region
          _
        $region24: #{pflow_fused_forward.1} parent=11 // pred_fallthru
          _
        // Predicated region
        $region25: #{pflow_fused_forward.1} parent=11 // pred_check
          %p471 = pneg %p146
        $region26: #{pflow_fused_forward.1} parent=11 // pred_check_branch
          %473 = sbr.rel (%p471) target = $region28
        $region27: #{pflow_fused_forward.1} parent=11 // pred_region
          _
        $region28: #{pflow_fused_forward.1} parent=11 // pred_fallthru
          _
        // Predicated region
        $region29: #{pflow_fused_forward.1} parent=11 // pred_check
          %p474 = pneg %p167
        $region30: #{pflow_fused_forward.1} parent=11 // pred_check_branch
          %476 = sbr.rel (%p474) target = $region32
        $region31: #{pflow_fused_forward.1} parent=11 // pred_region
          _
        $region32: #{pflow_fused_forward.1} parent=11 // pred_fallthru
          _
        // Predicated region
        $region33: #{pflow_fused_forward.1} parent=11 // pred_check
          %p477 = pneg %p188
        $region34: #{pflow_fused_forward.1} parent=11 // pred_check_branch
          %479 = sbr.rel (%p477) target = $region36
        $region35: #{pflow_fused_forward.1} parent=11 // pred_region
          %s481 = ssub.s32 128, 128
          %482 = vsyncadd [#allocation6], %s481
          %s484 = sshll.u32 [#allocation5], 4
          %s485 = int_to_ptr.vmem [resolvable:$true] %s484
          %487 = dma.hbm_to_vmem [thread:$0]  %s6, 128, %s485, [#allocation6]
        $region36: #{pflow_fused_forward.1} parent=11 // pred_fallthru
          _
        // Predicated region
        $region37: #{pflow_fused_forward.1} parent=11 // pred_check
          %p488 = pneg %p209
        $region38: #{pflow_fused_forward.1} parent=11 // pred_check_branch
          %490 = sbr.rel (%p488) target = $region40
        $region39: #{pflow_fused_forward.1} parent=11 // pred_region
          _
        $region40: #{pflow_fused_forward.1} parent=11 // pred_fallthru
          _
        // Predicated region
        $region41: #{pflow_fused_forward.1} parent=11 // pred_check
          %p491 = pneg %p230
        $region42: #{pflow_fused_forward.1} parent=11 // pred_check_branch
          %493 = sbr.rel (%p491) target = $region44
        $region43: #{pflow_fused_forward.1} parent=11 // pred_region
          %s495 = ssub.s32 16, 16
          %496 = vsyncadd [#allocation6], %s495
          %s498 = sshll.u32 [#allocation7], 4
          %s499 = int_to_ptr.vmem [resolvable:$true] %s498
          %501 = dma.hbm_to_vmem [thread:$0]  %s8, 16, %s499, [#allocation6]
        $region44: #{pflow_fused_forward.1} parent=11 // pred_fallthru
          _
        // Predicated region
        $region45: #{pflow_fused_forward.1} parent=11 // pred_check
          %p502 = pneg %p251
        $region46: #{pflow_fused_forward.1} parent=11 // pred_check_branch
          %504 = sbr.rel (%p502) target = $region48
        $region47: #{pflow_fused_forward.1} parent=11 // pred_region
          _
        $region48: #{pflow_fused_forward.1} parent=11 // pred_fallthru
          _
        // Predicated region
        $region49: #{pflow_fused_forward.1} parent=11 // pred_check
          %p505 = pneg %p272
        $region50: #{pflow_fused_forward.1} parent=11 // pred_check_branch
          %507 = sbr.rel (%p505) target = $region52
        $region51: #{pflow_fused_forward.1} parent=11 // pred_region
          _
        $region52: #{pflow_fused_forward.1} parent=11 // pred_fallthru
          _
        // Predicated region
        $region53: #{pflow_fused_forward.1} parent=11 // pred_check
          %p508 = pneg %p293
        $region54: #{pflow_fused_forward.1} parent=11 // pred_check_branch
          %510 = sbr.rel (%p508) target = $region56
        $region55: #{pflow_fused_forward.1} parent=11 // pred_region
          %s512 = ssub.s32 16, 16
          %513 = vsyncadd [#allocation9], %s512
          %s515 = sshll.u32 [#allocation8], 4
          %s516 = int_to_ptr.vmem [resolvable:$true] %s515
          %518 = dma.hbm_to_vmem [thread:$0]  %s11, 16, %s516, [#allocation9]
        $region56: #{pflow_fused_forward.1} parent=11 // pred_fallthru
          _
        // Predicated region
        $region57: #{pflow_fused_forward.1} parent=11 // pred_check
          %p519 = pneg %p314
        $region58: #{pflow_fused_forward.1} parent=11 // pred_check_branch
          %521 = sbr.rel (%p519) target = $region60
        $region59: #{pflow_fused_forward.1} parent=11 // pred_region
          _
        $region60: #{pflow_fused_forward.1} parent=11 // pred_fallthru
          _
        // Predicated region
        $region61: #{pflow_fused_forward.1} parent=11 // pred_check
          %p522 = pneg %p335
        $region62: #{pflow_fused_forward.1} parent=11 // pred_check_branch
          %524 = sbr.rel (%p522) target = $region64
        $region63: #{pflow_fused_forward.1} parent=11 // pred_region
          %s526 = ssub.s32 16, 16
          %527 = vsyncadd [#allocation9], %s526
          %s529 = sshll.u32 [#allocation10], 4
          %s530 = int_to_ptr.vmem [resolvable:$true] %s529
          %532 = dma.hbm_to_vmem [thread:$0]  %s13, 16, %s530, [#allocation9]
        $region64: #{pflow_fused_forward.1} parent=11 // pred_fallthru
          _
      $region12: #{pflow_fused_forward.1} parent=5 // pred_fallthru
        _
      %p533 = scmp.lt.s32.totalorder %s36, 2
      // Predicated region
      $region65: #{pflow_fused_forward.1} parent=5 // pred_check
        %p534 = pneg %p533
      $region66: #{pflow_fused_forward.1} parent=5 // pred_check_branch
        %536 = sbr.rel (%p534) target = $region68
      $region67: #{pflow_fused_forward.1} parent=5 // pred_region
        // Predicated region
        $region69: #{pflow_fused_forward.1} parent=67 // pred_check
          %p537 = pneg %p56
        $region70: #{pflow_fused_forward.1} parent=67 // pred_check_branch
          %539 = sbr.rel (%p537) target = $region72
        $region71: #{pflow_fused_forward.1} parent=67 // pred_region
          %p540 = scmp.lt.s32.totalorder %s36, 1
          %s541 = scalar_select %p540, %s36, 1
          %s542 = smul.addr %s541, 2
          %s543 = smul.addr %s542, 8
          %s544 = scalar_lea.vmem %s0, %s543
        $region72: #{pflow_fused_forward.1} parent=67 // pred_fallthru
          _
      $region68: #{pflow_fused_forward.1} parent=5 // pred_fallthru
        _
      %p545 = scmp.le.s32.totalorder 1, %s36
      %p546 = scmp.lt.s32.totalorder %s36, 3
      %p547 = pnand %p545, %p546
      %p548 = pneg %p547
      // Predicated region
      $region73: #{pflow_fused_forward.1} parent=5 // pred_check
        _
      $region74: #{pflow_fused_forward.1} parent=5 // pred_check_branch
        %550 = sbr.rel (%p547) target = $region76
      $region75: #{pflow_fused_forward.1} parent=5 // pred_region
        %s551 = ssub.s32 %s36, 1
        // Predicated region
        $region77: #{pflow_fused_forward.1} parent=75 // pred_check
          %p552 = pneg %p83
        $region78: #{pflow_fused_forward.1} parent=75 // pred_check_branch
          %554 = sbr.rel (%p552) target = $region80
        $region79: #{pflow_fused_forward.1} parent=75 // pred_region
          %555 = dma.done [#allocation3], 128
        $region80: #{pflow_fused_forward.1} parent=75 // pred_fallthru
          _
        // Predicated region
        $region81: #{pflow_fused_forward.1} parent=75 // pred_check
          %p556 = pneg %p188
        $region82: #{pflow_fused_forward.1} parent=75 // pred_check_branch
          %558 = sbr.rel (%p556) target = $region84
        $region83: #{pflow_fused_forward.1} parent=75 // pred_region
          %559 = dma.done [#allocation6], 128
        $region84: #{pflow_fused_forward.1} parent=75 // pred_fallthru
          _
        // Predicated region
        $region85: #{pflow_fused_forward.1} parent=75 // pred_check
          %p560 = pneg %p230
        $region86: #{pflow_fused_forward.1} parent=75 // pred_check_branch
          %562 = sbr.rel (%p560) target = $region88
        $region87: #{pflow_fused_forward.1} parent=75 // pred_region
          %563 = dma.done [#allocation6], 16
        $region88: #{pflow_fused_forward.1} parent=75 // pred_fallthru
          _
        // Predicated region
        $region89: #{pflow_fused_forward.1} parent=75 // pred_check
          %p564 = pneg %p293
        $region90: #{pflow_fused_forward.1} parent=75 // pred_check_branch
          %566 = sbr.rel (%p564) target = $region92
        $region91: #{pflow_fused_forward.1} parent=75 // pred_region
          %567 = dma.done [#allocation9], 16
        $region92: #{pflow_fused_forward.1} parent=75 // pred_fallthru
          _
        // Predicated region
        $region93: #{pflow_fused_forward.1} parent=75 // pred_check
          %p568 = pneg %p335
        $region94: #{pflow_fused_forward.1} parent=75 // pred_check_branch
          %570 = sbr.rel (%p568) target = $region96
        $region95: #{pflow_fused_forward.1} parent=75 // pred_region
          %571 = dma.done [#allocation9], 16
        $region96: #{pflow_fused_forward.1} parent=75 // pred_fallthru
          _
        %p572 = scmp.lt.s32.totalorder %s41, 1
        %s573 = scalar_select %p572, %s41, 1
        %s574 = smul.addr %s573, 2
        %s575 = smul.addr %s574, 8
        %s576 = scalar_lea.vmem %s0, %s575
        %p577 = pneg %p62
        %p578 = pneg %p59
        %p579 = pneg %p83
        %p580 = pneg %p80
        %p581 = pneg %p104
        %p582 = pneg %p101
        %p583 = pneg %p125
        %p584 = pneg %p122
        %p585 = pneg %p146
        %p586 = pneg %p143
        %p587 = pneg %p167
        %p588 = pneg %p164
        %p589 = pneg %p188
        %p590 = pneg %p185
        %p591 = pneg %p209
        %p592 = pneg %p206
        %p593 = pneg %p230
        %p594 = pneg %p227
        %p595 = pneg %p251
        %p596 = pneg %p248
        %p597 = pneg %p272
        %p598 = pneg %p269
        %p599 = pneg %p293
        %p600 = pneg %p290
        %p601 = pneg %p314
        %p602 = pneg %p311
        %p603 = pneg %p335
        %p604 = pneg %p332
        %p605 = pneg %p361
        %p606 = pneg %p358
        %s607 = sand.u32 %s348, 1
        %s608 = scalar_lea.sflag [#allocation4], %s607
        %s609 = sand.u32 %s348, 1
        %s610 = smul.addr %s609, 8
        %s611 = scalar_lea.vmem [#allocation11], %s610
        %p612 = pneg %p387
        %p613 = pneg %p384
        %s614 = sand.u32 %s41, 1
        %s615 = scalar_lea.sflag [#allocation13], %s614
        %s616 = sand.u32 %s374, 1
        %s617 = smul.addr %s616, 8
        %s618 = scalar_lea.vmem [#allocation12], %s617
        %p619 = pneg %p413
        %p620 = pneg %p410
        %s621 = sand.u32 %s41, 1
        %s622 = scalar_lea.sflag [#allocation13], %s621
        %s623 = sand.u32 %s400, 1
        %s624 = smul.addr %s623, 16
        %s625 = scalar_lea.vmem [#allocation14], %s624
        %p626 = pneg %p439
        %p627 = pneg %p436
        %s628 = sand.u32 %s426, 1
        %s629 = scalar_lea.sflag [#allocation16], %s628
        %s630 = sand.u32 %s426, 1
        %s631 = smul.addr %s630, 8
        %s632 = scalar_lea.vmem [#allocation15], %s631
        %p633 = scmp.lt.s32.totalorder %s41, 1
        %s634 = scalar_select %p633, %s41, 1
        %s635 = smul.addr %s634, 2
        %s636 = smul.addr %s635, 8
        %s637 = scalar_lea.vmem %s0, %s636
        %v639 = vld [vmem:[%s637] sm:$0xff]
        %v640 = vld [vmem:[%s637 + $0x8] sm:$0xff]
        %v641 = vld [vmem:[#allocation2] sm:$0xff]
        %v642 = vpack.c.bf16 %v640, %v639
        %v643 = vpack.c.bf16 %v641, %v641
        %v644 = vld [vmem:[%s2] sm:$0x1]
        %v646 = vlaneseq
        %v647 = vshrl.u32 %v646, 7
        %v648 = vsub.s32 0, %v647
        %v649 = vrot.slane %v644, %v648
        %vm651 = vcmask 64512
        %v653 = vsel %vm651, %v642, 0
        %vm655 = vcmask 1043456
        %v657 = vsel %vm655, %v643, 0
        %659 = vmatprep.subr.bf16.mxu0 0
        %660 = vmatpush1.bf16.msra.mxu0 %v657
        %661 = vmatprep.subr.bf16.mxu0 0
        %662 = vmatpush1.bf16.msra.mxu0 0
        %663 = vmatprep.subr.bf16.mxu0 0
        %664 = vmatpush1.bf16.msra.mxu0 0
        %665 = vmatprep.subr.bf16.mxu0 0
        %666 = vmatpush1.bf16.msra.mxu0 0
        %667 = vmatprep.subr.bf16.mxu0 0
        %668 = vmatpush1.bf16.msra.mxu0 0
        %669 = vmatprep.subr.bf16.mxu0 0
        %670 = vmatpush1.bf16.msra.mxu0 0
        %671 = vmatprep.subr.bf16.mxu0 0
        %672 = vmatpush1.bf16.msra.mxu0 0
        %673 = vmatprep.subr.bf16.mxu0 0
        %674 = vmatpush1.bf16.msra.mxu0 0
        %675 = vmatprep.subr.bf16.mxu0 0
        %676 = vmatpush1.bf16.msra.mxu0 0
        %677 = vmatprep.subr.bf16.mxu0 0
        %678 = vmatpush1.bf16.msra.mxu0 0
        %679 = vmatprep.subr.bf16.mxu0 0
        %680 = vmatpush1.bf16.msra.mxu0 0
        %681 = vmatprep.subr.bf16.mxu0 0
        %682 = vmatpush1.bf16.msra.mxu0 0
        %683 = vmatprep.subr.bf16.mxu0 0
        %684 = vmatpush1.bf16.msra.mxu0 0
        %685 = vmatprep.subr.bf16.mxu0 0
        %686 = vmatpush1.bf16.msra.mxu0 0
        %687 = vmatprep.subr.bf16.mxu0 0
        %688 = vmatpush1.bf16.msra.mxu0 0
        %689 = vmatprep.subr.bf16.mxu0 0
        %690 = vmatpush1.bf16.msra.mxu0 0
        %691 = vmatprep.mubr.bf16.mxu0 0
        %692 = vmatmul.mubr.bf16.gmra.mrb[0].mxu0 %v653
        %v693 = vpop.f32.mrb[0].mxu0
        %v694 = vadd.f32 %v649, %v693
        %v695 = vpop.f32.mrb[0].mxu0
        %v696 = vpop.f32.mrb[0].mxu0
        %v697 = vadd.f32 %v649, %v696
        %v698 = vpop.f32.mrb[0].mxu0
        %699 = vdwg.mxu0
        %v700 = vmax.f32 %v694, 0.0
        %v701 = vmax.f32 %v697, 0.0
        %vm702 = vcmask 261120
        %v703 = vsel %vm702, %v700, 0.0
        %v704 = vsel %vm702, %v701, 0.0
        %v705 = vadd.f32 %v703, %v704
        %v706 = vrot.slane %v705, 4
        %v707 = vadd.f32 %v705, %v706
        %v708 = vrot.slane %v707, 2
        %v709 = vadd.f32 %v707, %v708
        %v710 = vrot.slane %v709, 1
        %v711 = vadd.f32 %v709, %v710
        %v712 = vrcp.pop 16.0
        %v713 = vmul.f32 %v711, %v712
        %v714 = vld [vmem:[%s3] sm:$0xff]
        %v715 = vld [vmem:[%s3 + $0x8] sm:$0xff]
        %v716 = vld [vmem:[%s3 + $0x10] sm:$0xff]
        %v717 = vld [vmem:[%s3 + $0x18] sm:$0xff]
        %v718 = vpack.c.bf16 %v701, %v700
        %v719 = vpack.c.bf16 %v715, %v714
        %v720 = vpack.c.bf16 %v717, %v716
        %v721 = vld [vmem:[%s4] sm:$0xff]
        %v722 = vld [vmem:[%s4 + $0x8] sm:$0xff]
        %v723 = vld [vmem:[%s4 + $0x10] sm:$0xff]
        %v724 = vld [vmem:[%s4 + $0x18] sm:$0xff]
        %v725 = vpack.c.bf16 %v713, %v713
        %v726 = vpack.c.bf16 %v722, %v721
        %v727 = vpack.c.bf16 %v724, %v723
        %v729 = vsel %vm702, %v725, 0
        %731 = vmatprep.subr.bf16.mxu0 0
        %732 = vmatpush1.bf16.msra.mxu0 %v726
        %733 = vmatprep.subr.bf16.mxu0 0
        %734 = vmatpush1.bf16.msra.mxu0 %v727
        %735 = vmatprep.subr.bf16.mxu0 0
        %736 = vmatpush1.bf16.msra.mxu0 0
        %737 = vmatprep.subr.bf16.mxu0 0
        %738 = vmatpush1.bf16.msra.mxu0 0
        %739 = vmatprep.subr.bf16.mxu0 0
        %740 = vmatpush1.bf16.msra.mxu0 0
        %741 = vmatprep.subr.bf16.mxu0 0
        %742 = vmatpush1.bf16.msra.mxu0 0
        %743 = vmatprep.subr.bf16.mxu0 0
        %744 = vmatpush1.bf16.msra.mxu0 0
        %745 = vmatprep.subr.bf16.mxu0 0
        %746 = vmatpush1.bf16.msra.mxu0 0
        %747 = vmatprep.subr.bf16.mxu0 0
        %748 = vmatpush1.bf16.msra.mxu0 0
        %749 = vmatprep.subr.bf16.mxu0 0
        %750 = vmatpush1.bf16.msra.mxu0 0
        %751 = vmatprep.subr.bf16.mxu0 0
        %752 = vmatpush1.bf16.msra.mxu0 0
        %753 = vmatprep.subr.bf16.mxu0 0
        %754 = vmatpush1.bf16.msra.mxu0 0
        %755 = vmatprep.subr.bf16.mxu0 0
        %756 = vmatpush1.bf16.msra.mxu0 0
        %757 = vmatprep.subr.bf16.mxu0 0
        %758 = vmatpush1.bf16.msra.mxu0 0
        %759 = vmatprep.subr.bf16.mxu0 0
        %760 = vmatpush1.bf16.msra.mxu0 0
        %761 = vmatprep.subr.bf16.mxu0 0
        %762 = vmatpush1.bf16.msra.mxu0 0
        %763 = vmatprep.mubr.bf16.mxu0 0
        %764 = vmatmul.mubr.bf16.gmra.mrb[0].mxu0 %v729
        %v765 = vpop.f32.mrb[0].mxu0
        %v766 = vadd.f32 0.0, %v765
        %v767 = vpop.f32.mrb[0].mxu0
        %v768 = vpop.f32.mrb[0].mxu0
        %v769 = vpop.f32.mrb[0].mxu0
        %770 = vdwg.mxu0
        %v771 = vlaneseq
        %v772 = vshrl.u32 %v771, 7
        %v773 = vsub.s32 0, %v772
        %v774 = vrot.slane %v766, %v773
        %v776 = vsel %vm702, %v718, 0
        %778 = vmatprep.subr.bf16.mxu0 0
        %779 = vmatpush1.bf16.msra.mxu0 %v719
        %780 = vmatprep.subr.bf16.mxu0 0
        %781 = vmatpush1.bf16.msra.mxu0 %v720
        %782 = vmatprep.subr.bf16.mxu0 0
        %783 = vmatpush1.bf16.msra.mxu0 0
        %784 = vmatprep.subr.bf16.mxu0 0
        %785 = vmatpush1.bf16.msra.mxu0 0
        %786 = vmatprep.subr.bf16.mxu0 0
        %787 = vmatpush1.bf16.msra.mxu0 0
        %788 = vmatprep.subr.bf16.mxu0 0
        %789 = vmatpush1.bf16.msra.mxu0 0
        %790 = vmatprep.subr.bf16.mxu0 0
        %791 = vmatpush1.bf16.msra.mxu0 0
        %792 = vmatprep.subr.bf16.mxu0 0
        %793 = vmatpush1.bf16.msra.mxu0 0
        %794 = vmatprep.subr.bf16.mxu0 0
        %795 = vmatpush1.bf16.msra.mxu0 0
        %796 = vmatprep.subr.bf16.mxu0 0
        %797 = vmatpush1.bf16.msra.mxu0 0
        %798 = vmatprep.subr.bf16.mxu0 0
        %799 = vmatpush1.bf16.msra.mxu0 0
        %800 = vmatprep.subr.bf16.mxu0 0
        %801 = vmatpush1.bf16.msra.mxu0 0
        %802 = vmatprep.subr.bf16.mxu0 0
        %803 = vmatpush1.bf16.msra.mxu0 0
        %804 = vmatprep.subr.bf16.mxu0 0
        %805 = vmatpush1.bf16.msra.mxu0 0
        %806 = vmatprep.subr.bf16.mxu0 0
        %807 = vmatpush1.bf16.msra.mxu0 0
        %808 = vmatprep.subr.bf16.mxu0 0
        %809 = vmatpush1.bf16.msra.mxu0 0
        %810 = vmatprep.mubr.bf16.mxu0 0
        %811 = vmatmul.mubr.bf16.gmra.mrb[0].mxu0 %v776
        %v812 = vpop.f32.mrb[0].mxu0
        %v813 = vadd.f32 %v774, %v812
        %v814 = vpop.f32.mrb[0].mxu0
        %v815 = vpop.f32.mrb[0].mxu0
        %v816 = vadd.f32 %v774, %v815
        %v817 = vpop.f32.mrb[0].mxu0
        %818 = vdwg.mxu0
        %v819 = vld [vmem:[%s5] sm:$0x1]
        %v821 = vlaneseq
        %v822 = vshrl.u32 %v821, 7
        %v823 = vsub.s32 0, %v822
        %v824 = vrot.slane %v819, %v823
        %v826 = vadd.f32 %v813, %v824
        %v827 = vadd.f32 %v816, %v824
        %v828 = vmax.f32 %v826, 0.0
        %v829 = vmax.f32 %v827, 0.0
        %830 = vst.msk [vmem:[%s625] sm:$0xff] %vm702, %v828
        %831 = vst.msk [vmem:[%s625 + $0x8] sm:$0xff] %vm702, %v829
        %v832 = vld [vmem:[#allocation5] sm:$0xff]
        %v833 = vpack.c.bf16 %v832, %v832
        %v834 = vpack.c.bf16 %v829, %v828
        %v836 = vsel %vm702, %v833, 0
        %v839 = vsel %vm702, %v834, 0
        %841 = vmatprep.subr.bf16.mxu0 0
        %842 = vmatpush1.bf16.xpose.msra.mxu0 %v839
        %843 = vmatprep.subr.bf16.mxu0 0
        %844 = vmatpush1.bf16.xpose.msra.mxu0 0
        %845 = vmatprep.subr.bf16.mxu0 0
        %846 = vmatpush1.bf16.xpose.msra.mxu0 0
        %847 = vmatprep.subr.bf16.mxu0 0
        %848 = vmatpush1.bf16.xpose.msra.mxu0 0
        %849 = vmatprep.subr.bf16.mxu0 0
        %850 = vmatpush1.bf16.xpose.msra.mxu0 0
        %851 = vmatprep.subr.bf16.mxu0 0
        %852 = vmatpush1.bf16.xpose.msra.mxu0 0
        %853 = vmatprep.subr.bf16.mxu0 0
        %854 = vmatpush1.bf16.xpose.msra.mxu0 0
        %855 = vmatprep.subr.bf16.mxu0 0
        %856 = vmatpush1.bf16.xpose.msra.mxu0 0
        %857 = vmatprep.subr.bf16.mxu0 0
        %858 = vmatpush1.bf16.xpose.msra.mxu0 0
        %859 = vmatprep.subr.bf16.mxu0 0
        %860 = vmatpush1.bf16.xpose.msra.mxu0 0
        %861 = vmatprep.subr.bf16.mxu0 0
        %862 = vmatpush1.bf16.xpose.msra.mxu0 0
        %863 = vmatprep.subr.bf16.mxu0 0
        %864 = vmatpush1.bf16.xpose.msra.mxu0 0
        %865 = vmatprep.subr.bf16.mxu0 0
        %866 = vmatpush1.bf16.xpose.msra.mxu0 0
        %867 = vmatprep.subr.bf16.mxu0 0
        %868 = vmatpush1.bf16.xpose.msra.mxu0 0
        %869 = vmatprep.subr.bf16.mxu0 0
        %870 = vmatpush1.bf16.xpose.msra.mxu0 0
        %871 = vmatprep.subr.bf16.mxu0 0
        %872 = vmatpush1.bf16.xpose.msra.mxu0 0
        %873 = vmatprep.mubr.bf16.mxu0 0
        %874 = vmatmul.mubr.bf16.gmra.mrb[0].mxu0 %v836
        %v875 = vpop.f32.mrb[0].mxu0
        %v876 = vadd.f32 0.0, %v875
        %v877 = vpop.f32.mrb[0].mxu0
        %v878 = vpop.f32.mrb[0].mxu0
        %v879 = vpop.f32.mrb[0].mxu0
        %880 = vdwg.mxu0
        %v881 = vmul.f32 %v876, 0.17677669
        %vm882 = vcmask 130048
        %v883 = vsel %vm882, %v881, -inf
        %884 = vmax.xlane.f32.xlu0 %v883
        %v885 = vpop.xlane.xlu0 %884
        %v886 = vsub.f32 %v881, %v885
        %v887 = vmul.f32 %v886, 1.442695
        %v888 = vpow.pop %v887
        %v889 = vsel %vm882, %v888, 0.0
        %890 = vadd.xlane.f32.xlu0 %v889
        %v891 = vpop.xlane.xlu0 %890
        %v892 = vrcp.pop %v891
        %v893 = vmul.f32 %v888, %v892
        %v894 = vpack.c.bf16 %v893, %v893
        %v896 = vsel %vm882, %v894, 0
        %898 = vmatprep.subr.bf16.mxu0 0
        %899 = vmatpush1.bf16.msra.mxu0 %v834
        %900 = vmatprep.subr.bf16.mxu0 0
        %901 = vmatpush1.bf16.msra.mxu0 0
        %902 = vmatprep.subr.bf16.mxu0 0
        %903 = vmatpush1.bf16.msra.mxu0 0
        %904 = vmatprep.subr.bf16.mxu0 0
        %905 = vmatpush1.bf16.msra.mxu0 0
        %906 = vmatprep.subr.bf16.mxu0 0
        %907 = vmatpush1.bf16.msra.mxu0 0
        %908 = vmatprep.subr.bf16.mxu0 0
        %909 = vmatpush1.bf16.msra.mxu0 0
        %910 = vmatprep.subr.bf16.mxu0 0
        %911 = vmatpush1.bf16.msra.mxu0 0
        %912 = vmatprep.subr.bf16.mxu0 0
        %913 = vmatpush1.bf16.msra.mxu0 0
        %914 = vmatprep.subr.bf16.mxu0 0
        %915 = vmatpush1.bf16.msra.mxu0 0
        %916 = vmatprep.subr.bf16.mxu0 0
        %917 = vmatpush1.bf16.msra.mxu0 0
        %918 = vmatprep.subr.bf16.mxu0 0
        %919 = vmatpush1.bf16.msra.mxu0 0
        %920 = vmatprep.subr.bf16.mxu0 0
        %921 = vmatpush1.bf16.msra.mxu0 0
        %922 = vmatprep.subr.bf16.mxu0 0
        %923 = vmatpush1.bf16.msra.mxu0 0
        %924 = vmatprep.subr.bf16.mxu0 0
        %925 = vmatpush1.bf16.msra.mxu0 0
        %926 = vmatprep.subr.bf16.mxu0 0
        %927 = vmatpush1.bf16.msra.mxu0 0
        %928 = vmatprep.subr.bf16.mxu0 0
        %929 = vmatpush1.bf16.msra.mxu0 0
        %930 = vmatprep.mubr.bf16.mxu0 0
        %931 = vmatmul.mubr.bf16.gmra.mrb[0].mxu0 %v896
        %v932 = vpop.f32.mrb[0].mxu0
        %v933 = vadd.f32 0.0, %v932
        %v934 = vpop.f32.mrb[0].mxu0
        %v935 = vpop.f32.mrb[0].mxu0
        %v936 = vpop.f32.mrb[0].mxu0
        %937 = vdwg.mxu0
        %v938 = vadd.f32 %v832, %v933
        %v939 = vld [vmem:[%s7] sm:$0xff]
        %v940 = vld [vmem:[%s7 + $0x8] sm:$0xff]
        %v941 = vld [vmem:[%s7 + $0x10] sm:$0xff]
        %v942 = vld [vmem:[%s7 + $0x18] sm:$0xff]
        %v943 = vpack.c.bf16 %v938, %v938
        %v944 = vpack.c.bf16 %v940, %v939
        %v945 = vpack.c.bf16 %v942, %v941
        %v946 = vld [vmem:[#allocation7] sm:$0x1]
        %v948 = vlaneseq
        %v949 = vshrl.u32 %v948, 7
        %v950 = vsub.s32 0, %v949
        %v951 = vrot.slane %v946, %v950
        %v954 = vsel %vm702, %v943, 0
        %956 = vmatprep.subr.bf16.mxu0 0
        %957 = vmatpush1.bf16.msra.mxu0 %v944
        %958 = vmatprep.subr.bf16.mxu0 0
        %959 = vmatpush1.bf16.msra.mxu0 %v945
        %960 = vmatprep.subr.bf16.mxu0 0
        %961 = vmatpush1.bf16.msra.mxu0 0
        %962 = vmatprep.subr.bf16.mxu0 0
        %963 = vmatpush1.bf16.msra.mxu0 0
        %964 = vmatprep.subr.bf16.mxu0 0
        %965 = vmatpush1.bf16.msra.mxu0 0
        %966 = vmatprep.subr.bf16.mxu0 0
        %967 = vmatpush1.bf16.msra.mxu0 0
        %968 = vmatprep.subr.bf16.mxu0 0
        %969 = vmatpush1.bf16.msra.mxu0 0
        %970 = vmatprep.subr.bf16.mxu0 0
        %971 = vmatpush1.bf16.msra.mxu0 0
        %972 = vmatprep.subr.bf16.mxu0 0
        %973 = vmatpush1.bf16.msra.mxu0 0
        %974 = vmatprep.subr.bf16.mxu0 0
        %975 = vmatpush1.bf16.msra.mxu0 0
        %976 = vmatprep.subr.bf16.mxu0 0
        %977 = vmatpush1.bf16.msra.mxu0 0
        %978 = vmatprep.subr.bf16.mxu0 0
        %979 = vmatpush1.bf16.msra.mxu0 0
        %980 = vmatprep.subr.bf16.mxu0 0
        %981 = vmatpush1.bf16.msra.mxu0 0
        %982 = vmatprep.subr.bf16.mxu0 0
        %983 = vmatpush1.bf16.msra.mxu0 0
        %984 = vmatprep.subr.bf16.mxu0 0
        %985 = vmatpush1.bf16.msra.mxu0 0
        %986 = vmatprep.subr.bf16.mxu0 0
        %987 = vmatpush1.bf16.msra.mxu0 0
        %988 = vmatprep.mubr.bf16.mxu0 0
        %989 = vmatmul.mubr.bf16.gmra.mrb[0].mxu0 %v954
        %v990 = vpop.f32.mrb[0].mxu0
        %v991 = vadd.f32 %v951, %v990
        %v992 = vpop.f32.mrb[0].mxu0
        %v993 = vpop.f32.mrb[0].mxu0
        %v994 = vpop.f32.mrb[0].mxu0
        %995 = vdwg.mxu0
        %v996 = vmax.f32 %v991, 0.0
        %v997 = vpack.c.bf16 %v996, %v996
        %v999 = vsel %vm702, %v997, 0
        %1001 = vmatprep.subr.bf16.mxu0 0
        %1002 = vmatpush1.bf16.xpose.msra.mxu0 %v839
        %1003 = vmatprep.subr.bf16.mxu0 0
        %1004 = vmatpush1.bf16.xpose.msra.mxu0 0
        %1005 = vmatprep.subr.bf16.mxu0 0
        %1006 = vmatpush1.bf16.xpose.msra.mxu0 0
        %1007 = vmatprep.subr.bf16.mxu0 0
        %1008 = vmatpush1.bf16.xpose.msra.mxu0 0
        %1009 = vmatprep.subr.bf16.mxu0 0
        %1010 = vmatpush1.bf16.xpose.msra.mxu0 0
        %1011 = vmatprep.subr.bf16.mxu0 0
        %1012 = vmatpush1.bf16.xpose.msra.mxu0 0
        %1013 = vmatprep.subr.bf16.mxu0 0
        %1014 = vmatpush1.bf16.xpose.msra.mxu0 0
        %1015 = vmatprep.subr.bf16.mxu0 0
        %1016 = vmatpush1.bf16.xpose.msra.mxu0 0
        %1017 = vmatprep.subr.bf16.mxu0 0
        %1018 = vmatpush1.bf16.xpose.msra.mxu0 0
        %1019 = vmatprep.subr.bf16.mxu0 0
        %1020 = vmatpush1.bf16.xpose.msra.mxu0 0
        %1021 = vmatprep.subr.bf16.mxu0 0
        %1022 = vmatpush1.bf16.xpose.msra.mxu0 0
        %1023 = vmatprep.subr.bf16.mxu0 0
        %1024 = vmatpush1.bf16.xpose.msra.mxu0 0
        %1025 = vmatprep.subr.bf16.mxu0 0
        %1026 = vmatpush1.bf16.xpose.msra.mxu0 0
        %1027 = vmatprep.subr.bf16.mxu0 0
        %1028 = vmatpush1.bf16.xpose.msra.mxu0 0
        %1029 = vmatprep.subr.bf16.mxu0 0
        %1030 = vmatpush1.bf16.xpose.msra.mxu0 0
        %1031 = vmatprep.subr.bf16.mxu0 0
        %1032 = vmatpush1.bf16.xpose.msra.mxu0 0
        %1033 = vmatprep.mubr.bf16.mxu0 0
        %1034 = vmatmul.mubr.bf16.gmra.mrb[0].mxu0 %v999
        %v1035 = vpop.f32.mrb[0].mxu0
        %v1036 = vadd.f32 0.0, %v1035
        %v1037 = vpop.f32.mrb[0].mxu0
        %v1038 = vpop.f32.mrb[0].mxu0
        %v1039 = vpop.f32.mrb[0].mxu0
        %1040 = vdwg.mxu0
        %v1041 = vmul.f32 %v1036, 0.17677669
        %v1042 = vsel %vm882, %v1041, -inf
        %1043 = vmax.xlane.f32.xlu0 %v1042
        %v1044 = vpop.xlane.xlu0 %1043
        %v1045 = vsub.f32 %v1041, %v1044
        %v1046 = vmul.f32 %v1045, 1.442695
        %v1047 = vpow.pop %v1046
        %v1048 = vsel %vm882, %v1047, 0.0
        %1049 = vadd.xlane.f32.xlu0 %v1048
        %v1050 = vpop.xlane.xlu0 %1049
        %v1051 = vrcp.pop %v1050
        %v1052 = vmul.f32 %v1047, %v1051
        %v1053 = vpack.c.bf16 %v1052, %v1052
        %v1055 = vsel %vm882, %v1053, 0
        %1057 = vmatprep.subr.bf16.mxu0 0
        %1058 = vmatpush1.bf16.msra.mxu0 %v834
        %1059 = vmatprep.subr.bf16.mxu0 0
        %1060 = vmatpush1.bf16.msra.mxu0 0
        %1061 = vmatprep.subr.bf16.mxu0 0
        %1062 = vmatpush1.bf16.msra.mxu0 0
        %1063 = vmatprep.subr.bf16.mxu0 0
        %1064 = vmatpush1.bf16.msra.mxu0 0
        %1065 = vmatprep.subr.bf16.mxu0 0
        %1066 = vmatpush1.bf16.msra.mxu0 0
        %1067 = vmatprep.subr.bf16.mxu0 0
        %1068 = vmatpush1.bf16.msra.mxu0 0
        %1069 = vmatprep.subr.bf16.mxu0 0
        %1070 = vmatpush1.bf16.msra.mxu0 0
        %1071 = vmatprep.subr.bf16.mxu0 0
        %1072 = vmatpush1.bf16.msra.mxu0 0
        %1073 = vmatprep.subr.bf16.mxu0 0
        %1074 = vmatpush1.bf16.msra.mxu0 0
        %1075 = vmatprep.subr.bf16.mxu0 0
        %1076 = vmatpush1.bf16.msra.mxu0 0
        %1077 = vmatprep.subr.bf16.mxu0 0
        %1078 = vmatpush1.bf16.msra.mxu0 0
        %1079 = vmatprep.subr.bf16.mxu0 0
        %1080 = vmatpush1.bf16.msra.mxu0 0
        %1081 = vmatprep.subr.bf16.mxu0 0
        %1082 = vmatpush1.bf16.msra.mxu0 0
        %1083 = vmatprep.subr.bf16.mxu0 0
        %1084 = vmatpush1.bf16.msra.mxu0 0
        %1085 = vmatprep.subr.bf16.mxu0 0
        %1086 = vmatpush1.bf16.msra.mxu0 0
        %1087 = vmatprep.subr.bf16.mxu0 0
        %1088 = vmatpush1.bf16.msra.mxu0 0
        %1089 = vmatprep.mubr.bf16.mxu0 0
        %1090 = vmatmul.mubr.bf16.gmra.mrb[0].mxu0 %v1055
        %v1091 = vpop.f32.mrb[0].mxu0
        %v1092 = vadd.f32 0.0, %v1091
        %v1093 = vpop.f32.mrb[0].mxu0
        %v1094 = vpop.f32.mrb[0].mxu0
        %v1095 = vpop.f32.mrb[0].mxu0
        %1096 = vdwg.mxu0
        %v1097 = vadd.f32 %v996, %v1092
        %v1098 = vpack.c.bf16 %v1097, %v1097
        %v1100 = vsel %vm702, %v1098, 0
        %1102 = vmatprep.subr.bf16.mxu0 0
        %1103 = vmatpush1.bf16.msra.mxu0 %v944
        %1104 = vmatprep.subr.bf16.mxu0 0
        %1105 = vmatpush1.bf16.msra.mxu0 %v945
        %1106 = vmatprep.subr.bf16.mxu0 0
        %1107 = vmatpush1.bf16.msra.mxu0 0
        %1108 = vmatprep.subr.bf16.mxu0 0
        %1109 = vmatpush1.bf16.msra.mxu0 0
        %1110 = vmatprep.subr.bf16.mxu0 0
        %1111 = vmatpush1.bf16.msra.mxu0 0
        %1112 = vmatprep.subr.bf16.mxu0 0
        %1113 = vmatpush1.bf16.msra.mxu0 0
        %1114 = vmatprep.subr.bf16.mxu0 0
        %1115 = vmatpush1.bf16.msra.mxu0 0
        %1116 = vmatprep.subr.bf16.mxu0 0
        %1117 = vmatpush1.bf16.msra.mxu0 0
        %1118 = vmatprep.subr.bf16.mxu0 0
        %1119 = vmatpush1.bf16.msra.mxu0 0
        %1120 = vmatprep.subr.bf16.mxu0 0
        %1121 = vmatpush1.bf16.msra.mxu0 0
        %1122 = vmatprep.subr.bf16.mxu0 0
        %1123 = vmatpush1.bf16.msra.mxu0 0
        %1124 = vmatprep.subr.bf16.mxu0 0
        %1125 = vmatpush1.bf16.msra.mxu0 0
        %1126 = vmatprep.subr.bf16.mxu0 0
        %1127 = vmatpush1.bf16.msra.mxu0 0
        %1128 = vmatprep.subr.bf16.mxu0 0
        %1129 = vmatpush1.bf16.msra.mxu0 0
        %1130 = vmatprep.subr.bf16.mxu0 0
        %1131 = vmatpush1.bf16.msra.mxu0 0
        %1132 = vmatprep.subr.bf16.mxu0 0
        %1133 = vmatpush1.bf16.msra.mxu0 0
        %1134 = vmatprep.mubr.bf16.mxu0 0
        %1135 = vmatmul.mubr.bf16.gmra.mrb[0].mxu0 %v1100
        %v1136 = vpop.f32.mrb[0].mxu0
        %v1137 = vadd.f32 %v951, %v1136
        %v1138 = vpop.f32.mrb[0].mxu0
        %v1139 = vpop.f32.mrb[0].mxu0
        %v1140 = vpop.f32.mrb[0].mxu0
        %1141 = vdwg.mxu0
        %v1142 = vmax.f32 %v1137, 0.0
        %v1143 = vpack.c.bf16 %v1142, %v1142
        %v1145 = vsel %vm702, %v1143, 0
        %1147 = vmatprep.subr.bf16.mxu0 0
        %1148 = vmatpush1.bf16.xpose.msra.mxu0 %v839
        %1149 = vmatprep.subr.bf16.mxu0 0
        %1150 = vmatpush1.bf16.xpose.msra.mxu0 0
        %1151 = vmatprep.subr.bf16.mxu0 0
        %1152 = vmatpush1.bf16.xpose.msra.mxu0 0
        %1153 = vmatprep.subr.bf16.mxu0 0
        %1154 = vmatpush1.bf16.xpose.msra.mxu0 0
        %1155 = vmatprep.subr.bf16.mxu0 0
        %1156 = vmatpush1.bf16.xpose.msra.mxu0 0
        %1157 = vmatprep.subr.bf16.mxu0 0
        %1158 = vmatpush1.bf16.xpose.msra.mxu0 0
        %1159 = vmatprep.subr.bf16.mxu0 0
        %1160 = vmatpush1.bf16.xpose.msra.mxu0 0
        %1161 = vmatprep.subr.bf16.mxu0 0
        %1162 = vmatpush1.bf16.xpose.msra.mxu0 0
        %1163 = vmatprep.subr.bf16.mxu0 0
        %1164 = vmatpush1.bf16.xpose.msra.mxu0 0
        %1165 = vmatprep.subr.bf16.mxu0 0
        %1166 = vmatpush1.bf16.xpose.msra.mxu0 0
        %1167 = vmatprep.subr.bf16.mxu0 0
        %1168 = vmatpush1.bf16.xpose.msra.mxu0 0
        %1169 = vmatprep.subr.bf16.mxu0 0
        %1170 = vmatpush1.bf16.xpose.msra.mxu0 0
        %1171 = vmatprep.subr.bf16.mxu0 0
        %1172 = vmatpush1.bf16.xpose.msra.mxu0 0
        %1173 = vmatprep.subr.bf16.mxu0 0
        %1174 = vmatpush1.bf16.xpose.msra.mxu0 0
        %1175 = vmatprep.subr.bf16.mxu0 0
        %1176 = vmatpush1.bf16.xpose.msra.mxu0 0
        %1177 = vmatprep.subr.bf16.mxu0 0
        %1178 = vmatpush1.bf16.xpose.msra.mxu0 0
        %1179 = vmatprep.mubr.bf16.mxu0 0
        %1180 = vmatmul.mubr.bf16.gmra.mrb[0].mxu0 %v1145
        %v1181 = vpop.f32.mrb[0].mxu0
        %v1182 = vadd.f32 0.0, %v1181
        %v1183 = vpop.f32.mrb[0].mxu0
        %v1184 = vpop.f32.mrb[0].mxu0
        %v1185 = vpop.f32.mrb[0].mxu0
        %1186 = vdwg.mxu0
        %v1187 = vmul.f32 %v1182, 0.17677669
        %v1188 = vsel %vm882, %v1187, -inf
        %1189 = vmax.xlane.f32.xlu0 %v1188
        %v1190 = vpop.xlane.xlu0 %1189
        %v1191 = vsub.f32 %v1187, %v1190
        %v1192 = vmul.f32 %v1191, 1.442695
        %v1193 = vpow.pop %v1192
        %v1194 = vsel %vm882, %v1193, 0.0
        %1195 = vadd.xlane.f32.xlu0 %v1194
        %v1196 = vpop.xlane.xlu0 %1195
        %v1197 = vrcp.pop %v1196
        %v1198 = vmul.f32 %v1193, %v1197
        %v1199 = vpack.c.bf16 %v1198, %v1198
        %v1201 = vsel %vm882, %v1199, 0
        %1203 = vmatprep.subr.bf16.mxu0 0
        %1204 = vmatpush1.bf16.msra.mxu0 %v834
        %1205 = vmatprep.subr.bf16.mxu0 0
        %1206 = vmatpush1.bf16.msra.mxu0 0
        %1207 = vmatprep.subr.bf16.mxu0 0
        %1208 = vmatpush1.bf16.msra.mxu0 0
        %1209 = vmatprep.subr.bf16.mxu0 0
        %1210 = vmatpush1.bf16.msra.mxu0 0
        %1211 = vmatprep.subr.bf16.mxu0 0
        %1212 = vmatpush1.bf16.msra.mxu0 0
        %1213 = vmatprep.subr.bf16.mxu0 0
        %1214 = vmatpush1.bf16.msra.mxu0 0
        %1215 = vmatprep.subr.bf16.mxu0 0
        %1216 = vmatpush1.bf16.msra.mxu0 0
        %1217 = vmatprep.subr.bf16.mxu0 0
        %1218 = vmatpush1.bf16.msra.mxu0 0
        %1219 = vmatprep.subr.bf16.mxu0 0
        %1220 = vmatpush1.bf16.msra.mxu0 0
        %1221 = vmatprep.subr.bf16.mxu0 0
        %1222 = vmatpush1.bf16.msra.mxu0 0
        %1223 = vmatprep.subr.bf16.mxu0 0
        %1224 = vmatpush1.bf16.msra.mxu0 0
        %1225 = vmatprep.subr.bf16.mxu0 0
        %1226 = vmatpush1.bf16.msra.mxu0 0
        %1227 = vmatprep.subr.bf16.mxu0 0
        %1228 = vmatpush1.bf16.msra.mxu0 0
        %1229 = vmatprep.subr.bf16.mxu0 0
        %1230 = vmatpush1.bf16.msra.mxu0 0
        %1231 = vmatprep.subr.bf16.mxu0 0
        %1232 = vmatpush1.bf16.msra.mxu0 0
        %1233 = vmatprep.subr.bf16.mxu0 0
        %1234 = vmatpush1.bf16.msra.mxu0 0
        %1235 = vmatprep.mubr.bf16.mxu0 0
        %1236 = vmatmul.mubr.bf16.gmra.mrb[0].mxu0 %v1201
        %v1237 = vpop.f32.mrb[0].mxu0
        %v1238 = vadd.f32 0.0, %v1237
        %v1239 = vpop.f32.mrb[0].mxu0
        %v1240 = vpop.f32.mrb[0].mxu0
        %v1241 = vpop.f32.mrb[0].mxu0
        %1242 = vdwg.mxu0
        %v1243 = vadd.f32 %v1142, %v1238
        %v1244 = vpack.c.bf16 %v1243, %v1243
        %v1246 = vsel %vm702, %v1244, 0
        %1248 = vmatprep.subr.bf16.mxu0 0
        %1249 = vmatpush1.bf16.msra.mxu0 %v944
        %1250 = vmatprep.subr.bf16.mxu0 0
        %1251 = vmatpush1.bf16.msra.mxu0 %v945
        %1252 = vmatprep.subr.bf16.mxu0 0
        %1253 = vmatpush1.bf16.msra.mxu0 0
        %1254 = vmatprep.subr.bf16.mxu0 0
        %1255 = vmatpush1.bf16.msra.mxu0 0
        %1256 = vmatprep.subr.bf16.mxu0 0
        %1257 = vmatpush1.bf16.msra.mxu0 0
        %1258 = vmatprep.subr.bf16.mxu0 0
        %1259 = vmatpush1.bf16.msra.mxu0 0
        %1260 = vmatprep.subr.bf16.mxu0 0
        %1261 = vmatpush1.bf16.msra.mxu0 0
        %1262 = vmatprep.subr.bf16.mxu0 0
        %1263 = vmatpush1.bf16.msra.mxu0 0
        %1264 = vmatprep.subr.bf16.mxu0 0
        %1265 = vmatpush1.bf16.msra.mxu0 0
        %1266 = vmatprep.subr.bf16.mxu0 0
        %1267 = vmatpush1.bf16.msra.mxu0 0
        %1268 = vmatprep.subr.bf16.mxu0 0
        %1269 = vmatpush1.bf16.msra.mxu0 0
        %1270 = vmatprep.subr.bf16.mxu0 0
        %1271 = vmatpush1.bf16.msra.mxu0 0
        %1272 = vmatprep.subr.bf16.mxu0 0
        %1273 = vmatpush1.bf16.msra.mxu0 0
        %1274 = vmatprep.subr.bf16.mxu0 0
        %1275 = vmatpush1.bf16.msra.mxu0 0
        %1276 = vmatprep.subr.bf16.mxu0 0
        %1277 = vmatpush1.bf16.msra.mxu0 0
        %1278 = vmatprep.subr.bf16.mxu0 0
        %1279 = vmatpush1.bf16.msra.mxu0 0
        %1280 = vmatprep.mubr.bf16.mxu0 0
        %1281 = vmatmul.mubr.bf16.gmra.mrb[0].mxu0 %v1246
        %v1282 = vpop.f32.mrb[0].mxu0
        %v1283 = vadd.f32 %v951, %v1282
        %v1284 = vpop.f32.mrb[0].mxu0
        %v1285 = vpop.f32.mrb[0].mxu0
        %v1286 = vpop.f32.mrb[0].mxu0
        %1287 = vdwg.mxu0
        %v1288 = vmax.f32 %v1283, 0.0
        %1289 = vst.msk [vmem:[%s632] sm:$0xff] %vm702, %v1288
        %v1290 = vld [vmem:[%s9] sm:$0xff]
        %v1291 = vld [vmem:[%s9 + $0x8] sm:$0xff]
        %v1292 = vld [vmem:[%s9 + $0x10] sm:$0xff]
        %v1293 = vld [vmem:[%s9 + $0x18] sm:$0xff]
        %v1294 = vpack.c.bf16 %v1291, %v1290
        %v1295 = vpack.c.bf16 %v1293, %v1292
        %1296 = vmatprep.subr.bf16.mxu0 0
        %1297 = vmatpush1.bf16.msra.mxu0 %v1294
        %1298 = vmatprep.subr.bf16.mxu0 0
        %1299 = vmatpush1.bf16.msra.mxu0 %v1295
        %1300 = vmatprep.subr.bf16.mxu0 0
        %1301 = vmatpush1.bf16.msra.mxu0 0
        %1302 = vmatprep.subr.bf16.mxu0 0
        %1303 = vmatpush1.bf16.msra.mxu0 0
        %1304 = vmatprep.subr.bf16.mxu0 0
        %1305 = vmatpush1.bf16.msra.mxu0 0
        %1306 = vmatprep.subr.bf16.mxu0 0
        %1307 = vmatpush1.bf16.msra.mxu0 0
        %1308 = vmatprep.subr.bf16.mxu0 0
        %1309 = vmatpush1.bf16.msra.mxu0 0
        %1310 = vmatprep.subr.bf16.mxu0 0
        %1311 = vmatpush1.bf16.msra.mxu0 0
        %1312 = vmatprep.subr.bf16.mxu0 0
        %1313 = vmatpush1.bf16.msra.mxu0 0
        %1314 = vmatprep.subr.bf16.mxu0 0
        %1315 = vmatpush1.bf16.msra.mxu0 0
        %1316 = vmatprep.subr.bf16.mxu0 0
        %1317 = vmatpush1.bf16.msra.mxu0 0
        %1318 = vmatprep.subr.bf16.mxu0 0
        %1319 = vmatpush1.bf16.msra.mxu0 0
        %1320 = vmatprep.subr.bf16.mxu0 0
        %1321 = vmatpush1.bf16.msra.mxu0 0
        %1322 = vmatprep.subr.bf16.mxu0 0
        %1323 = vmatpush1.bf16.msra.mxu0 0
        %1324 = vmatprep.subr.bf16.mxu0 0
        %1325 = vmatpush1.bf16.msra.mxu0 0
        %1326 = vmatprep.subr.bf16.mxu0 0
        %1327 = vmatpush1.bf16.msra.mxu0 0
        %1328 = vmatprep.mubr.bf16.mxu0 0
        %1329 = vmatmul.mubr.bf16.gmra.mrb[0].mxu0 %v839
        %v1330 = vpop.f32.mrb[0].mxu0
        %v1331 = vadd.f32 0.0, %v1330
        %v1332 = vpop.f32.mrb[0].mxu0
        %v1333 = vpop.f32.mrb[0].mxu0
        %v1334 = vadd.f32 0.0, %v1333
        %v1335 = vpop.f32.mrb[0].mxu0
        %1336 = vdwg.mxu0
        %v1337 = vpack.c.bf16 %v1288, %v1288
        %v1338 = vpack.c.bf16 %v1334, %v1331
        %v1340 = vsel %vm702, %v1337, 0
        %v1343 = vsel %vm702, %v1338, 0
        %1345 = vmatprep.subr.bf16.mxu0 0
        %1346 = vmatpush1.bf16.xpose.msra.mxu0 %v1343
        %1347 = vmatprep.subr.bf16.mxu0 0
        %1348 = vmatpush1.bf16.xpose.msra.mxu0 0
        %1349 = vmatprep.subr.bf16.mxu0 0
        %1350 = vmatpush1.bf16.xpose.msra.mxu0 0
        %1351 = vmatprep.subr.bf16.mxu0 0
        %1352 = vmatpush1.bf16.xpose.msra.mxu0 0
        %1353 = vmatprep.subr.bf16.mxu0 0
        %1354 = vmatpush1.bf16.xpose.msra.mxu0 0
        %1355 = vmatprep.subr.bf16.mxu0 0
        %1356 = vmatpush1.bf16.xpose.msra.mxu0 0
        %1357 = vmatprep.subr.bf16.mxu0 0
        %1358 = vmatpush1.bf16.xpose.msra.mxu0 0
        %1359 = vmatprep.subr.bf16.mxu0 0
        %1360 = vmatpush1.bf16.xpose.msra.mxu0 0
        %1361 = vmatprep.subr.bf16.mxu0 0
        %1362 = vmatpush1.bf16.xpose.msra.mxu0 0
        %1363 = vmatprep.subr.bf16.mxu0 0
        %1364 = vmatpush1.bf16.xpose.msra.mxu0 0
        %1365 = vmatprep.subr.bf16.mxu0 0
        %1366 = vmatpush1.bf16.xpose.msra.mxu0 0
        %1367 = vmatprep.subr.bf16.mxu0 0
        %1368 = vmatpush1.bf16.xpose.msra.mxu0 0
        %1369 = vmatprep.subr.bf16.mxu0 0
        %1370 = vmatpush1.bf16.xpose.msra.mxu0 0
        %1371 = vmatprep.subr.bf16.mxu0 0
        %1372 = vmatpush1.bf16.xpose.msra.mxu0 0
        %1373 = vmatprep.subr.bf16.mxu0 0
        %1374 = vmatpush1.bf16.xpose.msra.mxu0 0
        %1375 = vmatprep.subr.bf16.mxu0 0
        %1376 = vmatpush1.bf16.xpose.msra.mxu0 0
        %1377 = vmatprep.mubr.bf16.mxu0 0
        %1378 = vmatmul.mubr.bf16.gmra.mrb[0].mxu0 %v1340
        %v1379 = vpop.f32.mrb[0].mxu0
        %v1380 = vadd.f32 0.0, %v1379
        %v1381 = vpop.f32.mrb[0].mxu0
        %v1382 = vpop.f32.mrb[0].mxu0
        %v1383 = vpop.f32.mrb[0].mxu0
        %1384 = vdwg.mxu0
        %v1385 = vmul.f32 %v1380, 0.17677669
        %v1386 = vld [vmem:[%s10] sm:$0xff]
        %v1387 = vld [vmem:[%s10 + $0x8] sm:$0xff]
        %v1388 = vld [vmem:[%s10 + $0x10] sm:$0xff]
        %v1389 = vld [vmem:[%s10 + $0x18] sm:$0xff]
        %v1390 = vpack.c.bf16 %v1387, %v1386
        %v1391 = vpack.c.bf16 %v1389, %v1388
        %v1392 = vld [vmem:[#allocation8] sm:$0x1]
        %v1394 = vlaneseq
        %v1395 = vshrl.u32 %v1394, 7
        %v1396 = vsub.s32 0, %v1395
        %v1397 = vrot.slane %v1392, %v1396
        %1399 = vmatprep.subr.bf16.mxu0 0
        %1400 = vmatpush1.bf16.msra.mxu0 %v1390
        %1401 = vmatprep.subr.bf16.mxu0 0
        %1402 = vmatpush1.bf16.msra.mxu0 %v1391
        %1403 = vmatprep.subr.bf16.mxu0 0
        %1404 = vmatpush1.bf16.msra.mxu0 0
        %1405 = vmatprep.subr.bf16.mxu0 0
        %1406 = vmatpush1.bf16.msra.mxu0 0
        %1407 = vmatprep.subr.bf16.mxu0 0
        %1408 = vmatpush1.bf16.msra.mxu0 0
        %1409 = vmatprep.subr.bf16.mxu0 0
        %1410 = vmatpush1.bf16.msra.mxu0 0
        %1411 = vmatprep.subr.bf16.mxu0 0
        %1412 = vmatpush1.bf16.msra.mxu0 0
        %1413 = vmatprep.subr.bf16.mxu0 0
        %1414 = vmatpush1.bf16.msra.mxu0 0
        %1415 = vmatprep.subr.bf16.mxu0 0
        %1416 = vmatpush1.bf16.msra.mxu0 0
        %1417 = vmatprep.subr.bf16.mxu0 0
        %1418 = vmatpush1.bf16.msra.mxu0 0
        %1419 = vmatprep.subr.bf16.mxu0 0
        %1420 = vmatpush1.bf16.msra.mxu0 0
        %1421 = vmatprep.subr.bf16.mxu0 0
        %1422 = vmatpush1.bf16.msra.mxu0 0
        %1423 = vmatprep.subr.bf16.mxu0 0
        %1424 = vmatpush1.bf16.msra.mxu0 0
        %1425 = vmatprep.subr.bf16.mxu0 0
        %1426 = vmatpush1.bf16.msra.mxu0 0
        %1427 = vmatprep.subr.bf16.mxu0 0
        %1428 = vmatpush1.bf16.msra.mxu0 0
        %1429 = vmatprep.subr.bf16.mxu0 0
        %1430 = vmatpush1.bf16.msra.mxu0 0
        %1431 = vmatprep.mubr.bf16.mxu0 0
        %1432 = vmatmul.mubr.bf16.gmra.mrb[0].mxu0 %v1340
        %v1433 = vpop.f32.mrb[0].mxu0
        %v1434 = vadd.f32 %v1397, %v1433
        %v1435 = vpop.f32.mrb[0].mxu0
        %v1436 = vpop.f32.mrb[0].mxu0
        %v1437 = vpop.f32.mrb[0].mxu0
        %1438 = vdwg.mxu0
        %1440 = vrot.lane.b32.xlu0 %v1434, 6
        %v1441 = vpop.permute.xlu0 %1440
        %v1443 = vsel %vm882, %v1385, %v1441
        %v1444 = vxor.u32 %v1443, 2147483648
        %v1445 = vmul.f32 %v1444, 1.442695
        %v1446 = vpow.pop %v1445
        %v1447 = vadd.f32 %v1446, 1.0
        %v1448 = vrcp.pop %v1447
        %v1449 = vmul.f32 1.0, %v1448
        %vm1450 = vcmask 138240
        %1451 = vst.msk [vmem:[%s611] sm:$0xff] %vm1450, %v1449
        %v1452 = vld [vmem:[%s12] sm:$0x1]
        %v1454 = vlaneseq
        %v1455 = vshrl.u32 %v1454, 7
        %v1456 = vsub.s32 0, %v1455
        %v1457 = vrot.slane %v1452, %v1456
        %v1459 = vmul.f32 %v1434, %v1457
        %v1460 = vld [vmem:[#allocation10] sm:$0x1]
        %v1462 = vlaneseq
        %v1463 = vshrl.u32 %v1462, 7
        %v1464 = vsub.s32 0, %v1463
        %v1465 = vrot.slane %v1460, %v1464
        %v1467 = vadd.f32 %v1459, %v1465
        %vm1468 = vcmp.gt.f32.partialorder %v1434, 0.0
        %v1469 = vsel %vm1468, 1, 0
        %v1470 = vcvt.s32.f32 %v1469
        %1472 = vrot.lane.b32.xlu0 %v1467, 3
        %v1473 = vpop.permute.xlu0 %1472
        %1475 = vrot.lane.b32.xlu0 %v1434, 3
        %v1476 = vpop.permute.xlu0 %1475
        %1479 = vrot.lane.b32.xlu0 %v1470, 3
        %v1480 = vpop.permute.xlu0 %1479
        %vm1482 = vcmask 23552
        %v1483 = vsel %vm1482, %v1434, %v1473
        %vm1484 = vcmask 48128
        %v1485 = vsel %vm1484, %v1483, %v1476
        %vm1486 = vcmask 97280
        %v1487 = vsel %vm1486, %v1485, %v1480
        %vm1488 = vcmask 105472
        %1489 = vst.msk [vmem:[%s618] sm:$0xff] %vm1488, %v1487
        %s1490 = sand.u32 %s348, 1
        %s1491 = scalar_lea.sflag [#allocation4], %s1490
        %s1492 = sand.u32 %s348, 1
        %s1493 = smul.addr %s1492, 8
        %s1494 = scalar_lea.vmem [#allocation11], %s1493
        %s1495 = sand.u32 %s41, 1
        %s1496 = scalar_lea.sflag [#allocation13], %s1495
        %s1497 = sand.u32 %s374, 1
        %s1498 = smul.addr %s1497, 8
        %s1499 = scalar_lea.vmem [#allocation12], %s1498
        %s1500 = sand.u32 %s41, 1
        %s1501 = scalar_lea.sflag [#allocation13], %s1500
        %s1502 = sand.u32 %s400, 1
        %s1503 = smul.addr %s1502, 16
        %s1504 = scalar_lea.vmem [#allocation14], %s1503
        %s1505 = sand.u32 %s426, 1
        %s1506 = scalar_lea.sflag [#allocation16], %s1505
        %s1507 = sand.u32 %s426, 1
        %s1508 = smul.addr %s1507, 8
        %s1509 = scalar_lea.vmem [#allocation15], %s1508
        // Predicated region
        $region97: #{pflow_fused_forward.1} parent=75 // pred_check
          %p1510 = pneg %p358
        $region98: #{pflow_fused_forward.1} parent=75 // pred_check_branch
          %1512 = sbr.rel (%p1510) target = $region100
        $region99: #{pflow_fused_forward.1} parent=75 // pred_region
          %s1514 = ssub.s32 128, 128
          %1515 = vsyncadd %s1491, %s1514
          %s1516 = smul.addr %s41, 128
          %s1517 = scalar_lea.hbm %s14, %s1516
          %s1519 = sshll.u32 %s1494, 4
          %s1520 = int_to_ptr.vmem [resolvable:$true] %s1519
          %1522 = dma.vmem_to_hbm [thread:$0]  %s1520, 128, %s1517, %s1491
        $region100: #{pflow_fused_forward.1} parent=75 // pred_fallthru
          _
        // Predicated region
        $region101: #{pflow_fused_forward.1} parent=75 // pred_check
          %p1523 = pneg %p384
        $region102: #{pflow_fused_forward.1} parent=75 // pred_check_branch
          %1525 = sbr.rel (%p1523) target = $region104
        $region103: #{pflow_fused_forward.1} parent=75 // pred_region
          %s1527 = ssub.s32 128, 128
          %1528 = vsyncadd %s1496, %s1527
          %s1529 = smul.addr %s41, 128
          %s1530 = scalar_lea.hbm %s15, %s1529
          %s1532 = sshll.u32 %s1499, 4
          %s1533 = int_to_ptr.vmem [resolvable:$true] %s1532
          %1535 = dma.vmem_to_hbm [thread:$0]  %s1533, 128, %s1530, %s1496
        $region104: #{pflow_fused_forward.1} parent=75 // pred_fallthru
          _
        // Predicated region
        $region105: #{pflow_fused_forward.1} parent=75 // pred_check
          %p1536 = pneg %p410
        $region106: #{pflow_fused_forward.1} parent=75 // pred_check_branch
          %1538 = sbr.rel (%p1536) target = $region108
        $region107: #{pflow_fused_forward.1} parent=75 // pred_region
          %s1540 = ssub.s32 256, 256
          %1541 = vsyncadd %s1501, %s1540
          %s1542 = smul.addr %s41, 2
          %s1543 = smul.addr %s1542, 128
          %s1544 = scalar_lea.hbm %s16, %s1543
          %s1545 = sshll.u32 %s1504, 4
          %s1546 = int_to_ptr.vmem [resolvable:$true] %s1545
          %1551 = dma.vmem_to_hbm [thread:$0]  %s1546, 256, %s1544, %s1501, 128, 128, 8
        $region108: #{pflow_fused_forward.1} parent=75 // pred_fallthru
          _
        // Predicated region
        $region109: #{pflow_fused_forward.1} parent=75 // pred_check
          %p1552 = pneg %p436
        $region110: #{pflow_fused_forward.1} parent=75 // pred_check_branch
          %1554 = sbr.rel (%p1552) target = $region112
        $region111: #{pflow_fused_forward.1} parent=75 // pred_region
          %s1556 = ssub.s32 128, 128
          %1557 = vsyncadd %s1506, %s1556
          %s1558 = smul.addr %s41, 128
          %s1559 = scalar_lea.hbm %s17, %s1558
          %s1561 = sshll.u32 %s1509, 4
          %s1562 = int_to_ptr.vmem [resolvable:$true] %s1561
          %1564 = dma.vmem_to_hbm [thread:$0]  %s1562, 128, %s1559, %s1506
        $region112: #{pflow_fused_forward.1} parent=75 // pred_fallthru
          _
      $region76: #{pflow_fused_forward.1} parent=5 // pred_fallthru
        _
      %p1565 = scmp.le.s32.totalorder 2, %s36
      // Predicated region
      $region113: #{pflow_fused_forward.1} parent=5 // pred_check
        %p1566 = pneg %p1565
      $region114: #{pflow_fused_forward.1} parent=5 // pred_check_branch
        %1568 = sbr.rel (%p1566) target = $region116
      $region115: #{pflow_fused_forward.1} parent=5 // pred_region
        %s1569 = ssub.s32 %s36, 2
        // Predicated region
        $region117: #{pflow_fused_forward.1} parent=115 // pred_check
          %p1570 = pneg %p364
        $region118: #{pflow_fused_forward.1} parent=115 // pred_check_branch
          %1572 = sbr.rel (%p1570) target = $region120
        $region119: #{pflow_fused_forward.1} parent=115 // pred_region
          %s1573 = sand.u32 %s349, 1
          %s1574 = scalar_lea.sflag [#allocation4], %s1573
          %s1575 = sand.u32 %s349, 1
          %s1576 = smul.addr %s1575, 8
          %s1577 = scalar_lea.vmem [#allocation11], %s1576
          %1578 = dma.done %s1574, 128
        $region120: #{pflow_fused_forward.1} parent=115 // pred_fallthru
          _
        // Predicated region
        $region121: #{pflow_fused_forward.1} parent=115 // pred_check
          %p1579 = pneg %p390
        $region122: #{pflow_fused_forward.1} parent=115 // pred_check_branch
          %1581 = sbr.rel (%p1579) target = $region124
        $region123: #{pflow_fused_forward.1} parent=115 // pred_region
          %s1582 = sand.u32 %s42, 1
          %s1583 = scalar_lea.sflag [#allocation13], %s1582
          %s1584 = sand.u32 %s375, 1
          %s1585 = smul.addr %s1584, 8
          %s1586 = scalar_lea.vmem [#allocation12], %s1585
          %1587 = dma.done %s1583, 128
        $region124: #{pflow_fused_forward.1} parent=115 // pred_fallthru
          _
        // Predicated region
        $region125: #{pflow_fused_forward.1} parent=115 // pred_check
          %p1588 = pneg %p416
        $region126: #{pflow_fused_forward.1} parent=115 // pred_check_branch
          %1590 = sbr.rel (%p1588) target = $region128
        $region127: #{pflow_fused_forward.1} parent=115 // pred_region
          %s1591 = sand.u32 %s42, 1
          %s1592 = scalar_lea.sflag [#allocation13], %s1591
          %s1593 = sand.u32 %s401, 1
          %s1594 = smul.addr %s1593, 16
          %s1595 = scalar_lea.vmem [#allocation14], %s1594
          %1596 = dma.done %s1592, 256
        $region128: #{pflow_fused_forward.1} parent=115 // pred_fallthru
          _
        // Predicated region
        $region129: #{pflow_fused_forward.1} parent=115 // pred_check
          %p1597 = pneg %p442
        $region130: #{pflow_fused_forward.1} parent=115 // pred_check_branch
          %1599 = sbr.rel (%p1597) target = $region132
        $region131: #{pflow_fused_forward.1} parent=115 // pred_region
          %s1600 = sand.u32 %s427, 1
          %s1601 = scalar_lea.sflag [#allocation16], %s1600
          %s1602 = sand.u32 %s427, 1
          %s1603 = smul.addr %s1602, 8
          %s1604 = scalar_lea.vmem [#allocation15], %s1603
          %1605 = dma.done %s1601, 128
        $region132: #{pflow_fused_forward.1} parent=115 // pred_fallthru
          _
      $region116: #{pflow_fused_forward.1} parent=5 // pred_fallthru
        _
    $region6: #{pflow_fused_forward.1} parent=1 // loop_footer
      %s40 = sadd.s32 1, %s36
    $region7: #{pflow_fused_forward.1} parent=1 // loop_footer_branch
      %35 = sbr.rel target = $region3
    $region8: #{pflow_fused_forward.1} parent=1 // loop_exit
      _
    %1606 = vsyncpa [#allocation3], 1
    %s1607 = scalar_lea.sflag [#allocation3], 1
    %1608 = vsyncpa %s1607, 1
    %1609 = vsyncpa [#allocation6], 1
    %1610 = vsyncpa [#allocation9], 1
    %1611 = vsyncpa [#allocation4], 1
    %s1612 = scalar_lea.sflag [#allocation4], 1
    %1613 = vsyncpa %s1612, 1
    %1614 = vsyncpa [#allocation13], 1
    %s1615 = scalar_lea.sflag [#allocation13], 1
    %1616 = vsyncpa %s1615, 1
    %1617 = vsyncpa [#allocation16], 1
    %s1618 = scalar_lea.sflag [#allocation16], 1
    %1619 = vsyncpa %s1618, 1

</llo_original>
